<compile_context>
chip_gen: v7x
topology: tpu7x:2x2x1
jax: 0.10.0
libtpu: 0.0.40
codegen_flags: <defaults>
</compile_context>

<pallas_src>
import jax
import jax.numpy as jnp
from jax import lax
from jax.experimental import pallas as pl
from jax.experimental.pallas import tpu as pltpu

LN_EPS = 1e-5


def _cdiv(a, b):
    return (a + b - 1) // b


def _round_up(a, b):
    return _cdiv(a, b) * b


# --------------------------------------------------------------------------
# Kernel: one (batch, row-tile) step = 9 tap GEMMs + fused LayerNorm.
# --------------------------------------------------------------------------
def _conv_ln_kernel(ee_ref, eeh_ref, eo_ref, eoh_ref, oe_ref, oo_ref,
                    w_ref, g_ref, b_ref, o_ref):
    th, wo, c = oo_ref.shape          # row tile, padded output width, Cin
    co = w_ref.shape[2]               # Cout = 2*Cin (true, unpadded)

    # (th+1)-row windows of the even-row planes: main block + 1-row halo block.
    ee = jnp.concatenate([ee_ref[...], eeh_ref[...]], axis=0)   # (th+1, wo+1, c)
    eo = jnp.concatenate([eo_ref[...], eoh_ref[...]], axis=0)   # (th+1, wo,   c)
    oe = oe_ref[...]                                            # (th,   wo+1, c)
    oo = oo_ref[...]                                            # (th,   wo,   c)

    # Tap (kh, kw) of output (h, w) reads x_pad[2h+kh, 2w+kw]; with parity
    # planes that is plane[h + kh//2, w + kw//2].  Order matches w_ref[t],
    # t = kh*3 + kw.
    taps = (
        ee[0:th, 0:wo],      eo[0:th, :],      ee[0:th, 1:wo + 1],       # kh=0
        oe[:, 0:wo],         oo,               oe[:, 1:wo + 1],          # kh=1
        ee[1:th + 1, 0:wo],  eo[1:th + 1, :],  ee[1:th + 1, 1:wo + 1],   # kh=2
    )

    acc = jnp.zeros((th * wo, co), jnp.float32)
    for t, tap in enumerate(taps):                              # static unroll
        acc = acc + jnp.dot(tap.reshape(th * wo, c), w_ref[t],
                            preferred_element_type=jnp.float32)

    # Fused LayerNorm over the true channel dim (two-pass variance, f32).
    mean = jnp.mean(acc, axis=-1, keepdims=True)
    var = jnp.mean(jnp.square(acc - mean), axis=-1, keepdims=True)
    y = (acc - mean) * lax.rsqrt(var + LN_EPS)
    y = y * g_ref[...] + b_ref[...]
    o_ref[...] = y.reshape(th, wo, co).astype(o_ref.dtype)


# --------------------------------------------------------------------------
# Tile selection / VMEM budgeting.
# --------------------------------------------------------------------------
def _vmem_estimate(th, wop, c, co, out_bytes):
    bf = 2  # bf16 inputs
    inp = 2 * bf * c * ((th + 1) * (wop + 1) + (th + 1) * wop
                        + th * (wop + 1) + th * wop)            # double-buffered
    out = 2 * th * wop * co * out_bytes                         # double-buffered
    acc = th * wop * co * 4
    tmp = 2 * (th + 1) * (2 * wop + 2) * c * bf + 2 * th * wop * c * bf
    wts = 2 * 9 * c * co * bf
    return inp + out + acc + tmp + wts


def _pick_row_tile(ho, wop, batch, c, co, out_bytes,
                   budget=24 * 2**20, target_rows=2048):
    th = max(1, min(ho, max(1, target_rows // max(wop, 1))))
    while th > 1 and _vmem_estimate(th, wop, c, co, out_bytes) > budget:
        th = max(1, th // 2)
    # Prefer a divisor of Ho so the output needs no epilogue slice.
    best = 1
    for d in range(1, th + 1):
        if ho % d == 0:
            best = d
    if 2 * best >= th:
        th = best
    # Make sure there are >= 2 grid steps so both v7x TensorCores get work.
    if batch * _cdiv(ho, th) < 2 and ho > 1:
        th = _cdiv(ho, 2)
    return th


# --------------------------------------------------------------------------
# Wrapper.
# --------------------------------------------------------------------------
@jax.jit
def conv_downsampler(x, conv_w, gamma, beta):
    """x: (B,H,W,C) f32/bf16, conv_w: (2C,C,3,3) PyTorch OIHW, gamma/beta: (2C,)."""
    B, H, W, C = x.shape
    Co = conv_w.shape[0]                       # 2 * C
    Ho = (H - 1) // 2 + 1
    Wo = (W - 1) // 2 + 1

    out_dtype = x.dtype
    out_bytes = jnp.dtype(out_dtype).itemsize

    Wop = _round_up(Wo, 8)                     # sublane-friendly padded width
    th = _pick_row_tile(Ho, Wop, B, C, Co, out_bytes)
    Hop = _round_up(Ho, th)
    n_h = Hop // th

    # ---- glue (~1x input bytes): bf16 cast + pad + 4 parity planes ----------
    xb = x.astype(jnp.bfloat16)
    x_pad = jnp.pad(xb, ((0, 0), (1, 2 * Hop - H), (1, 2 * Wop - W), (0, 0)))
    ee = x_pad[:, 0::2, 0::2, :]               # (B, Hop+1, Wop+1, C)
    eo = x_pad[:, 0::2, 1::2, :]               # (B, Hop+1, Wop,   C)
    oe = x_pad[:, 1::2, 0::2, :]               # (B, Hop,   Wop+1, C)
    oo = x_pad[:, 1::2, 1::2, :]               # (B, Hop,   Wop,   C)

    # conv weight OIHW -> (tap = kh*3+kw, Cin, Cout), bf16 for the MXU.
    w_taps = jnp.transpose(conv_w, (2, 3, 1, 0)).reshape(9, C, Co)
    w_taps = w_taps.astype(jnp.bfloat16)
    g2 = gamma.astype(jnp.float32).reshape(1, Co)
    b2 = beta.astype(jnp.float32).reshape(1, Co)

    def rows_main(b, i):
        return (b, i, 0, 0)

    def rows_halo(b, i):                       # 1-row block -> element index
        return (b, i * th + th, 0, 0)

    in_specs = [
        pl.BlockSpec((None, th, Wop + 1, C), rows_main),   # EE main rows
        pl.BlockSpec((None, 1, Wop + 1, C), rows_halo),    # EE halo row
        pl.BlockSpec((None, th, Wop, C), rows_main),       # EO main rows
        pl.BlockSpec((None, 1, Wop, C), rows_halo),        # EO halo row
        pl.BlockSpec((None, th, Wop + 1, C), rows_main),   # OE
        pl.BlockSpec((None, th, Wop, C), rows_main),       # OO
        pl.BlockSpec((9, C, Co), lambda b, i: (0, 0, 0)),  # all 9 tap weights
        pl.BlockSpec((1, Co), lambda b, i: (0, 0)),        # gamma
        pl.BlockSpec((1, Co), lambda b, i: (0, 0)),        # beta
    ]
    out_spec = pl.BlockSpec((None, th, Wop, Co), rows_main)

    est = _vmem_estimate(th, Wop, C, Co, out_bytes)
    vmem_limit = int(min(48 * 2**20, max(32 * 2**20, 2 * est)))  # v7x-safe

    out = pl.pallas_call(
        _conv_ln_kernel,
        out_shape=jax.ShapeDtypeStruct((B, Hop, Wop, Co), out_dtype),
        grid=(B, n_h),
        in_specs=in_specs,
        out_specs=out_spec,
        compiler_params=pltpu.CompilerParams(
            dimension_semantics=("parallel", "parallel"),
            vmem_limit_bytes=vmem_limit,
        ),
    )(ee, ee, eo, eo, oe, oo, w_taps, g2, b2)

    if Hop != Ho or Wop != Wo:                 # metadata-only when tiles divide
        out = out[:, :Ho, :Wo, :]
    return out


# --------------------------------------------------------------------------
# Pure-JAX f32 reference matching the PyTorch module.
# --------------------------------------------------------------------------
def _reference(x, conv_w, gamma, beta):
    w_hwio = jnp.transpose(conv_w, (2, 3, 1, 0))   # (3,3,Cin,Cout)
    y = jax.lax.conv_general_dilated(
        x, w_hwio, window_strides=(2, 2), padding=((1, 1), (1, 1)),
        dimension_numbers=("NHWC", "HWIO", "NHWC"))
    mean = jnp.mean(y, axis=-1, keepdims=True)
    var = jnp.mean(jnp.square(y - mean), axis=-1, keepdims=True)
    y = (y - mean) * jax.lax.rsqrt(var + LN_EPS)
    return y * gamma + beta


if __name__ == "__main__":
    key = jax.random.PRNGKey(0)
    k_x, k_w, k_g, k_b = jax.random.split(key, 4)

    B, H, W, dim = 2, 16, 16, 4
    x = jax.random.normal(k_x, (B, H, W, dim), dtype=jnp.float32)
    conv_w = 0.1 * jax.random.normal(k_w, (2 * dim, dim, 3, 3), dtype=jnp.float32)
    gamma = 1.0 + 0.05 * jax.random.normal(k_g, (2 * dim,), dtype=jnp.float32)
    beta = 0.05 * jax.random.normal(k_b, (2 * dim,), dtype=jnp.float32)

    out = jax.block_until_ready(conv_downsampler(x, conv_w, gamma, beta))
    ref = jax.block_until_ready(_reference(x, conv_w, gamma, beta))

    assert out.shape == (B, 8, 8, 2 * dim), out.shape
    max_err = float(jnp.max(jnp.abs(out - ref)))
    # bf16 MXU operands (f32 accumulation) -> slightly looser tolerance than f32.
    assert bool(jnp.allclose(out, ref, atol=5e-2, rtol=5e-2)), max_err

    print("KERNEL_OK")
</pallas_src>

<mosaic_0001>
module attributes {stable_mosaic.version = 11 : i64} {
  func.func @_conv_ln_kernel(%arg0: i32, %arg1: i32, %arg2: memref<1x8x9x4xbf16, #tpu.memory_space<vmem>>, %arg3: memref<1x1x9x4xbf16, #tpu.memory_space<vmem>>, %arg4: memref<1x8x8x4xbf16, #tpu.memory_space<vmem>>, %arg5: memref<1x1x8x4xbf16, #tpu.memory_space<vmem>>, %arg6: memref<1x8x9x4xbf16, #tpu.memory_space<vmem>>, %arg7: memref<1x8x8x4xbf16, #tpu.memory_space<vmem>>, %arg8: memref<9x4x8xbf16, #tpu.memory_space<vmem>>, %arg9: memref<1x8xf32, #tpu.memory_space<vmem>>, %arg10: memref<1x8xf32, #tpu.memory_space<vmem>>, %arg11: memref<1x8x8x8xf32, #tpu.memory_space<vmem>>) attributes {dimension_semantics = [#tpu.dimension_semantics<parallel>, #tpu.dimension_semantics<parallel>], iteration_bounds = array<i64: 2, 1>, scalar_prefetch = 0 : i64, scratch_operands = 0 : i64, tpu.core_type = #tpu.core_type<tc>, window_params = [{transform_indices = @transform_0, window_bounds = array<i64: 1, 8, 9, 4>}, {transform_indices = @transform_1, window_bounds = array<i64: 1, 1, 9, 4>}, {transform_indices = @transform_2, window_bounds = array<i64: 1, 8, 8, 4>}, {transform_indices = @transform_3, window_bounds = array<i64: 1, 1, 8, 4>}, {transform_indices = @transform_4, window_bounds = array<i64: 1, 8, 9, 4>}, {transform_indices = @transform_5, window_bounds = array<i64: 1, 8, 8, 4>}, {pipeline_mode = #tpu.pipeline_mode<synchronous>, transform_indices = @transform_6, window_bounds = array<i64: 9, 4, 8>}, {pipeline_mode = #tpu.pipeline_mode<synchronous>, transform_indices = @transform_7, window_bounds = array<i64: 1, 8>}, {pipeline_mode = #tpu.pipeline_mode<synchronous>, transform_indices = @transform_8, window_bounds = array<i64: 1, 8>}, {transform_indices = @transform_9, window_bounds = array<i64: 1, 8, 8, 8>}]} {
    %c0 = arith.constant 0 : index
    %c0_0 = arith.constant 0 : index
    %c0_1 = arith.constant 0 : index
    %c0_2 = arith.constant 0 : index
    %0 = vector.load %arg2[%c0, %c0_0, %c0_1, %c0_2] : memref<1x8x9x4xbf16, #tpu.memory_space<vmem>>, vector<1x8x9x4xbf16>
    %1 = vector.shape_cast %0 : vector<1x8x9x4xbf16> to vector<8x9x4xbf16>
    %c0_3 = arith.constant 0 : index
    %c0_4 = arith.constant 0 : index
    %c0_5 = arith.constant 0 : index
    %c0_6 = arith.constant 0 : index
    %2 = vector.load %arg3[%c0_3, %c0_4, %c0_5, %c0_6] : memref<1x1x9x4xbf16, #tpu.memory_space<vmem>>, vector<1x1x9x4xbf16>
    %3 = vector.shape_cast %2 : vector<1x1x9x4xbf16> to vector<1x9x4xbf16>
    %4 = tpu.concatenate %1, %3 in 0 : vector<8x9x4xbf16>, vector<1x9x4xbf16> -> vector<9x9x4xbf16>
    %c0_7 = arith.constant 0 : index
    %c0_8 = arith.constant 0 : index
    %c0_9 = arith.constant 0 : index
    %c0_10 = arith.constant 0 : index
    %5 = vector.load %arg4[%c0_7, %c0_8, %c0_9, %c0_10] : memref<1x8x8x4xbf16, #tpu.memory_space<vmem>>, vector<1x8x8x4xbf16>
    %6 = vector.shape_cast %5 : vector<1x8x8x4xbf16> to vector<8x8x4xbf16>
    %c0_11 = arith.constant 0 : index
    %c0_12 = arith.constant 0 : index
    %c0_13 = arith.constant 0 : index
    %c0_14 = arith.constant 0 : index
    %7 = vector.load %arg5[%c0_11, %c0_12, %c0_13, %c0_14] : memref<1x1x8x4xbf16, #tpu.memory_space<vmem>>, vector<1x1x8x4xbf16>
    %8 = vector.shape_cast %7 : vector<1x1x8x4xbf16> to vector<1x8x4xbf16>
    %9 = tpu.concatenate %6, %8 in 0 : vector<8x8x4xbf16>, vector<1x8x4xbf16> -> vector<9x8x4xbf16>
    %c0_15 = arith.constant 0 : index
    %c0_16 = arith.constant 0 : index
    %c0_17 = arith.constant 0 : index
    %c0_18 = arith.constant 0 : index
    %10 = vector.load %arg6[%c0_15, %c0_16, %c0_17, %c0_18] : memref<1x8x9x4xbf16, #tpu.memory_space<vmem>>, vector<1x8x9x4xbf16>
    %11 = vector.shape_cast %10 : vector<1x8x9x4xbf16> to vector<8x9x4xbf16>
    %c0_19 = arith.constant 0 : index
    %c0_20 = arith.constant 0 : index
    %c0_21 = arith.constant 0 : index
    %c0_22 = arith.constant 0 : index
    %12 = vector.load %arg7[%c0_19, %c0_20, %c0_21, %c0_22] : memref<1x8x8x4xbf16, #tpu.memory_space<vmem>>, vector<1x8x8x4xbf16>
    %13 = vector.shape_cast %12 : vector<1x8x8x4xbf16> to vector<8x8x4xbf16>
    %14 = vector.extract_strided_slice %4 {offsets = [0, 0, 0], sizes = [8, 8, 4], strides = [1, 1, 1]} : vector<9x9x4xbf16> to vector<8x8x4xbf16>
    %15 = vector.extract_strided_slice %9 {offsets = [0, 0, 0], sizes = [8, 8, 4], strides = [1, 1, 1]} : vector<9x8x4xbf16> to vector<8x8x4xbf16>
    %16 = vector.extract_strided_slice %4 {offsets = [0, 1, 0], sizes = [8, 8, 4], strides = [1, 1, 1]} : vector<9x9x4xbf16> to vector<8x8x4xbf16>
    %17 = vector.extract_strided_slice %11 {offsets = [0, 0, 0], sizes = [8, 8, 4], strides = [1, 1, 1]} : vector<8x9x4xbf16> to vector<8x8x4xbf16>
    %18 = vector.extract_strided_slice %11 {offsets = [0, 1, 0], sizes = [8, 8, 4], strides = [1, 1, 1]} : vector<8x9x4xbf16> to vector<8x8x4xbf16>
    %19 = vector.extract_strided_slice %4 {offsets = [1, 0, 0], sizes = [8, 8, 4], strides = [1, 1, 1]} : vector<9x9x4xbf16> to vector<8x8x4xbf16>
    %20 = vector.extract_strided_slice %9 {offsets = [1, 0, 0], sizes = [8, 8, 4], strides = [1, 1, 1]} : vector<9x8x4xbf16> to vector<8x8x4xbf16>
    %21 = vector.extract_strided_slice %4 {offsets = [1, 1, 0], sizes = [8, 8, 4], strides = [1, 1, 1]} : vector<9x9x4xbf16> to vector<8x8x4xbf16>
    %cst = arith.constant 0.000000e+00 : f32
    %22 = vector.broadcast %cst : f32 to vector<64x8xf32>
    %23 = vector.shape_cast %14 : vector<8x8x4xbf16> to vector<64x4xbf16>
    %c0_23 = arith.constant 0 : index
    %c0_24 = arith.constant 0 : index
    %c0_25 = arith.constant 0 : index
    %24 = vector.load %arg8[%c0_23, %c0_24, %c0_25] : memref<9x4x8xbf16, #tpu.memory_space<vmem>>, vector<1x4x8xbf16>
    %25 = vector.shape_cast %24 : vector<1x4x8xbf16> to vector<4x8xbf16>
    %cst_26 = arith.constant dense<0.000000e+00> : vector<64x8xf32>
    %26 = tpu.matmul %23, %25, %cst_26 {dimension_numbers = #tpu.dot_dimension_numbers<[1], [0], [0], [1], [0, 0, 1, 1], [], []>} : vector<64x4xbf16>, vector<4x8xbf16>, vector<64x8xf32> -> vector<64x8xf32>
    %27 = arith.addf %22, %26 : vector<64x8xf32>
    %28 = vector.shape_cast %15 : vector<8x8x4xbf16> to vector<64x4xbf16>
    %c1 = arith.constant 1 : index
    %c0_27 = arith.constant 0 : index
    %c0_28 = arith.constant 0 : index
    %29 = vector.load %arg8[%c1, %c0_27, %c0_28] : memref<9x4x8xbf16, #tpu.memory_space<vmem>>, vector<1x4x8xbf16>
    %30 = vector.shape_cast %29 : vector<1x4x8xbf16> to vector<4x8xbf16>
    %cst_29 = arith.constant dense<0.000000e+00> : vector<64x8xf32>
    %31 = tpu.matmul %28, %30, %cst_29 {dimension_numbers = #tpu.dot_dimension_numbers<[1], [0], [0], [1], [0, 0, 1, 1], [], []>} : vector<64x4xbf16>, vector<4x8xbf16>, vector<64x8xf32> -> vector<64x8xf32>
    %32 = arith.addf %27, %31 : vector<64x8xf32>
    %33 = vector.shape_cast %16 : vector<8x8x4xbf16> to vector<64x4xbf16>
    %c2 = arith.constant 2 : index
    %c0_30 = arith.constant 0 : index
    %c0_31 = arith.constant 0 : index
    %34 = vector.load %arg8[%c2, %c0_30, %c0_31] : memref<9x4x8xbf16, #tpu.memory_space<vmem>>, vector<1x4x8xbf16>
    %35 = vector.shape_cast %34 : vector<1x4x8xbf16> to vector<4x8xbf16>
    %cst_32 = arith.constant dense<0.000000e+00> : vector<64x8xf32>
    %36 = tpu.matmul %33, %35, %cst_32 {dimension_numbers = #tpu.dot_dimension_numbers<[1], [0], [0], [1], [0, 0, 1, 1], [], []>} : vector<64x4xbf16>, vector<4x8xbf16>, vector<64x8xf32> -> vector<64x8xf32>
    %37 = arith.addf %32, %36 : vector<64x8xf32>
    %38 = vector.shape_cast %17 : vector<8x8x4xbf16> to vector<64x4xbf16>
    %c3 = arith.constant 3 : index
    %c0_33 = arith.constant 0 : index
    %c0_34 = arith.constant 0 : index
    %39 = vector.load %arg8[%c3, %c0_33, %c0_34] : memref<9x4x8xbf16, #tpu.memory_space<vmem>>, vector<1x4x8xbf16>
    %40 = vector.shape_cast %39 : vector<1x4x8xbf16> to vector<4x8xbf16>
    %cst_35 = arith.constant dense<0.000000e+00> : vector<64x8xf32>
    %41 = tpu.matmul %38, %40, %cst_35 {dimension_numbers = #tpu.dot_dimension_numbers<[1], [0], [0], [1], [0, 0, 1, 1], [], []>} : vector<64x4xbf16>, vector<4x8xbf16>, vector<64x8xf32> -> vector<64x8xf32>
    %42 = arith.addf %37, %41 : vector<64x8xf32>
    %43 = vector.shape_cast %13 : vector<8x8x4xbf16> to vector<64x4xbf16>
    %c4 = arith.constant 4 : index
    %c0_36 = arith.constant 0 : index
    %c0_37 = arith.constant 0 : index
    %44 = vector.load %arg8[%c4, %c0_36, %c0_37] : memref<9x4x8xbf16, #tpu.memory_space<vmem>>, vector<1x4x8xbf16>
    %45 = vector.shape_cast %44 : vector<1x4x8xbf16> to vector<4x8xbf16>
    %cst_38 = arith.constant dense<0.000000e+00> : vector<64x8xf32>
    %46 = tpu.matmul %43, %45, %cst_38 {dimension_numbers = #tpu.dot_dimension_numbers<[1], [0], [0], [1], [0, 0, 1, 1], [], []>} : vector<64x4xbf16>, vector<4x8xbf16>, vector<64x8xf32> -> vector<64x8xf32>
    %47 = arith.addf %42, %46 : vector<64x8xf32>
    %48 = vector.shape_cast %18 : vector<8x8x4xbf16> to vector<64x4xbf16>
    %c5 = arith.constant 5 : index
    %c0_39 = arith.constant 0 : index
    %c0_40 = arith.constant 0 : index
    %49 = vector.load %arg8[%c5, %c0_39, %c0_40] : memref<9x4x8xbf16, #tpu.memory_space<vmem>>, vector<1x4x8xbf16>
    %50 = vector.shape_cast %49 : vector<1x4x8xbf16> to vector<4x8xbf16>
    %cst_41 = arith.constant dense<0.000000e+00> : vector<64x8xf32>
    %51 = tpu.matmul %48, %50, %cst_41 {dimension_numbers = #tpu.dot_dimension_numbers<[1], [0], [0], [1], [0, 0, 1, 1], [], []>} : vector<64x4xbf16>, vector<4x8xbf16>, vector<64x8xf32> -> vector<64x8xf32>
    %52 = arith.addf %47, %51 : vector<64x8xf32>
    %53 = vector.shape_cast %19 : vector<8x8x4xbf16> to vector<64x4xbf16>
    %c6 = arith.constant 6 : index
    %c0_42 = arith.constant 0 : index
    %c0_43 = arith.constant 0 : index
    %54 = vector.load %arg8[%c6, %c0_42, %c0_43] : memref<9x4x8xbf16, #tpu.memory_space<vmem>>, vector<1x4x8xbf16>
    %55 = vector.shape_cast %54 : vector<1x4x8xbf16> to vector<4x8xbf16>
    %cst_44 = arith.constant dense<0.000000e+00> : vector<64x8xf32>
    %56 = tpu.matmul %53, %55, %cst_44 {dimension_numbers = #tpu.dot_dimension_numbers<[1], [0], [0], [1], [0, 0, 1, 1], [], []>} : vector<64x4xbf16>, vector<4x8xbf16>, vector<64x8xf32> -> vector<64x8xf32>
    %57 = arith.addf %52, %56 : vector<64x8xf32>
    %58 = vector.shape_cast %20 : vector<8x8x4xbf16> to vector<64x4xbf16>
    %c7 = arith.constant 7 : index
    %c0_45 = arith.constant 0 : index
    %c0_46 = arith.constant 0 : index
    %59 = vector.load %arg8[%c7, %c0_45, %c0_46] : memref<9x4x8xbf16, #tpu.memory_space<vmem>>, vector<1x4x8xbf16>
    %60 = vector.shape_cast %59 : vector<1x4x8xbf16> to vector<4x8xbf16>
    %cst_47 = arith.constant dense<0.000000e+00> : vector<64x8xf32>
    %61 = tpu.matmul %58, %60, %cst_47 {dimension_numbers = #tpu.dot_dimension_numbers<[1], [0], [0], [1], [0, 0, 1, 1], [], []>} : vector<64x4xbf16>, vector<4x8xbf16>, vector<64x8xf32> -> vector<64x8xf32>
    %62 = arith.addf %57, %61 : vector<64x8xf32>
    %63 = vector.shape_cast %21 : vector<8x8x4xbf16> to vector<64x4xbf16>
    %c8 = arith.constant 8 : index
    %c0_48 = arith.constant 0 : index
    %c0_49 = arith.constant 0 : index
    %64 = vector.load %arg8[%c8, %c0_48, %c0_49] : memref<9x4x8xbf16, #tpu.memory_space<vmem>>, vector<1x4x8xbf16>
    %65 = vector.shape_cast %64 : vector<1x4x8xbf16> to vector<4x8xbf16>
    %cst_50 = arith.constant dense<0.000000e+00> : vector<64x8xf32>
    %66 = tpu.matmul %63, %65, %cst_50 {dimension_numbers = #tpu.dot_dimension_numbers<[1], [0], [0], [1], [0, 0, 1, 1], [], []>} : vector<64x4xbf16>, vector<4x8xbf16>, vector<64x8xf32> -> vector<64x8xf32>
    %67 = arith.addf %62, %66 : vector<64x8xf32>
    %cst_51 = arith.constant dense<0.000000e+00> : vector<64xf32>
    %68 = vector.multi_reduction <add>, %67, %cst_51 [1] : vector<64x8xf32> to vector<64xf32>
    %69 = vector.shape_cast %68 : vector<64xf32> to vector<64x1xf32>
    %cst_52 = arith.constant 8.000000e+00 : f32
    %70 = vector.broadcast %cst_52 : f32 to vector<64x1xf32>
    %71 = arith.divf %69, %70 : vector<64x1xf32>
    %72 = vector.broadcast %71 : vector<64x1xf32> to vector<64x8xf32>
    %73 = arith.subf %67, %72 : vector<64x8xf32>
    %74 = arith.mulf %73, %73 : vector<64x8xf32>
    %cst_53 = arith.constant dense<0.000000e+00> : vector<64xf32>
    %75 = vector.multi_reduction <add>, %74, %cst_53 [1] : vector<64x8xf32> to vector<64xf32>
    %76 = vector.shape_cast %75 : vector<64xf32> to vector<64x1xf32>
    %cst_54 = arith.constant 8.000000e+00 : f32
    %77 = vector.broadcast %cst_54 : f32 to vector<64x1xf32>
    %78 = arith.divf %76, %77 : vector<64x1xf32>
    %79 = vector.broadcast %71 : vector<64x1xf32> to vector<64x8xf32>
    %80 = arith.subf %67, %79 : vector<64x8xf32>
    %cst_55 = arith.constant 9.99999974E-6 : f32
    %81 = vector.broadcast %cst_55 : f32 to vector<64x1xf32>
    %82 = arith.addf %78, %81 : vector<64x1xf32>
    %83 = math.rsqrt %82 : vector<64x1xf32>
    %84 = vector.broadcast %83 : vector<64x1xf32> to vector<64x8xf32>
    %85 = arith.mulf %80, %84 : vector<64x8xf32>
    %c0_56 = arith.constant 0 : index
    %c0_57 = arith.constant 0 : index
    %86 = vector.load %arg9[%c0_56, %c0_57] : memref<1x8xf32, #tpu.memory_space<vmem>>, vector<1x8xf32>
    %87 = vector.broadcast %86 : vector<1x8xf32> to vector<64x8xf32>
    %88 = arith.mulf %85, %87 : vector<64x8xf32>
    %c0_58 = arith.constant 0 : index
    %c0_59 = arith.constant 0 : index
    %89 = vector.load %arg10[%c0_58, %c0_59] : memref<1x8xf32, #tpu.memory_space<vmem>>, vector<1x8xf32>
    %90 = vector.broadcast %89 : vector<1x8xf32> to vector<64x8xf32>
    %91 = arith.addf %88, %90 : vector<64x8xf32>
    %92 = vector.shape_cast %91 : vector<64x8xf32> to vector<8x8x8xf32>
    %c0_60 = arith.constant 0 : index
    %c0_61 = arith.constant 0 : index
    %c0_62 = arith.constant 0 : index
    %c0_63 = arith.constant 0 : index
    %93 = vector.load %arg11[%c0_60, %c0_61, %c0_62, %c0_63] : memref<1x8x8x8xf32, #tpu.memory_space<vmem>>, vector<1x8x8x8xf32>
    %94 = vector.shape_cast %93 : vector<1x8x8x8xf32> to vector<8x8x8xf32>
    %95 = vector.shape_cast %92 : vector<8x8x8xf32> to vector<1x8x8x8xf32>
    tpu.vector_store %arg11[%c0_60, %c0_61, %c0_62, %c0_63], %95 {strides = array<i32>} : memref<1x8x8x8xf32, #tpu.memory_space<vmem>>, vector<1x8x8x8xf32>,
    return
  }
  func.func @transform_0(%arg0: i32, %arg1: i32) -> (i32, i32, i32, i32) {
    %c0_i32 = arith.constant 0 : i32
    %c0_i32_0 = arith.constant 0 : i32
    %c0_i32_1 = arith.constant 0 : i32
    return %arg0, %arg1, %c0_i32, %c0_i32_0 : i32, i32, i32, i32
  }
  func.func @transform_1(%arg0: i32, %arg1: i32) -> (i32, i32, i32, i32) {
    %c8_i32 = arith.constant 8 : i32
    %0 = arith.muli %arg1, %c8_i32 : i32
    %c8_i32_0 = arith.constant 8 : i32
    %1 = arith.addi %0, %c8_i32_0 : i32
    %c0_i32 = arith.constant 0 : i32
    %c0_i32_1 = arith.constant 0 : i32
    %c0_i32_2 = arith.constant 0 : i32
    return %arg0, %1, %c0_i32, %c0_i32_1 : i32, i32, i32, i32
  }
  func.func @transform_2(%arg0: i32, %arg1: i32) -> (i32, i32, i32, i32) {
    %c0_i32 = arith.constant 0 : i32
    %c0_i32_0 = arith.constant 0 : i32
    %c0_i32_1 = arith.constant 0 : i32
    return %arg0, %arg1, %c0_i32, %c0_i32_0 : i32, i32, i32, i32
  }
  func.func @transform_3(%arg0: i32, %arg1: i32) -> (i32, i32, i32, i32) {
    %c8_i32 = arith.constant 8 : i32
    %0 = arith.muli %arg1, %c8_i32 : i32
    %c8_i32_0 = arith.constant 8 : i32
    %1 = arith.addi %0, %c8_i32_0 : i32
    %c0_i32 = arith.constant 0 : i32
    %c0_i32_1 = arith.constant 0 : i32
    %c0_i32_2 = arith.constant 0 : i32
    return %arg0, %1, %c0_i32, %c0_i32_1 : i32, i32, i32, i32
  }
  func.func @transform_4(%arg0: i32, %arg1: i32) -> (i32, i32, i32, i32) {
    %c0_i32 = arith.constant 0 : i32
    %c0_i32_0 = arith.constant 0 : i32
    %c0_i32_1 = arith.constant 0 : i32
    return %arg0, %arg1, %c0_i32, %c0_i32_0 : i32, i32, i32, i32
  }
  func.func @transform_5(%arg0: i32, %arg1: i32) -> (i32, i32, i32, i32) {
    %c0_i32 = arith.constant 0 : i32
    %c0_i32_0 = arith.constant 0 : i32
    %c0_i32_1 = arith.constant 0 : i32
    return %arg0, %arg1, %c0_i32, %c0_i32_0 : i32, i32, i32, i32
  }
  func.func @transform_6(%arg0: i32, %arg1: i32) -> (i32, i32, i32) {
    %c0_i32 = arith.constant 0 : i32
    %c0_i32_0 = arith.constant 0 : i32
    %c0_i32_1 = arith.constant 0 : i32
    %c0_i32_2 = arith.constant 0 : i32
    return %c0_i32, %c0_i32_0, %c0_i32_1 : i32, i32, i32
  }
  func.func @transform_7(%arg0: i32, %arg1: i32) -> (i32, i32) {
    %c0_i32 = arith.constant 0 : i32
    %c0_i32_0 = arith.constant 0 : i32
    %c0_i32_1 = arith.constant 0 : i32
    return %c0_i32, %c0_i32_0 : i32, i32
  }
  func.func @transform_8(%arg0: i32, %arg1: i32) -> (i32, i32) {
    %c0_i32 = arith.constant 0 : i32
    %c0_i32_0 = arith.constant 0 : i32
    %c0_i32_1 = arith.constant 0 : i32
    return %c0_i32, %c0_i32_0 : i32, i32
  }
  func.func @transform_9(%arg0: i32, %arg1: i32) -> (i32, i32, i32, i32) {
    %c0_i32 = arith.constant 0 : i32
    %c0_i32_0 = arith.constant 0 : i32
    %c0_i32_1 = arith.constant 0 : i32
    return %arg0, %arg1, %c0_i32, %c0_i32_0 : i32, i32, i32, i32
  }
}

</mosaic_0001>

<llo_original>
// kernel: conv_downsampler.1
$region0: #{conv_downsampler.1}
  #allocation0 [shape = 'u32[]', space=smem, size = 0x4, offset = 0x4, fixed_abs, tag = 'smem constant byte address 0x4 - core index']
  #allocation1 [shape = 'u32[144,128]{1,0:T(1,128)}', space=vmem, size = 0x12000, scoped, tag = 'internal scratch']
  %s0 = inlined_call_operand.vmem [shape: bf16[2,9,9,4], index: 0, kind: input, shape index: {}, may-alias: {0,1}]
  %s1 = inlined_call_operand.vmem [shape: bf16[2,9,9,4], index: 1, kind: input, shape index: {}, may-alias: {0,1}]
  %s2 = inlined_call_operand.vmem [shape: bf16[2,9,8,4], index: 2, kind: input, shape index: {}, may-alias: {2,3}]
  %s3 = inlined_call_operand.vmem [shape: bf16[2,9,8,4], index: 3, kind: input, shape index: {}, may-alias: {2,3}]
  %s4 = inlined_call_operand.vmem [shape: bf16[2,8,9,4], index: 4, kind: input, shape index: {}]
  %s5 = inlined_call_operand.vmem [shape: bf16[2,8,8,4], index: 5, kind: input, shape index: {}]
  %s6 = inlined_call_operand.vmem [shape: bf16[9,4,8], index: 6, kind: input, shape index: {}]
  %s7 = inlined_call_operand.vmem [shape: f32[1,8], index: 7, kind: input, shape index: {}]
  %s8 = inlined_call_operand.vmem [shape: f32[1,8], index: 8, kind: input, shape index: {}]
  %s9 = inlined_call_operand.hbm [shape: f32[2,8,8,8], index: 9, kind: output, shape index: {}]
  %s10 = sld [smem:[#allocation0]]
  $region69: #{conv_downsampler.1} parent=0
    _
  %s12 = ssub.s32 1, %s10
  %s13 = scalar_select 0, %s12, %s10
  $region1: #{conv_downsampler.1} parent=0
    #allocation2 [shape = 'u8[65536]{0}', space=vmem, size = 0x10000, scoped, tag = 'output window, operand 0']
    #allocation3 [shape = 's32[2]{0}', space=sflag, size = 0x8, scoped, tag = 'scoped memory for conv_downsampler.1']
    %14 = vsyncpa [#allocation3], 0
    %s15 = scalar_lea.sflag [#allocation3], 1
    %16 = vsyncpa %s15, 0
    loop: start=0, step=1, limit=4
    $region2: #{conv_downsampler.1} parent=1 // loop_pre_header
      _
    $region3: #{conv_downsampler.1} parent=1 // loop_header
      %s18 = sphi 0, %s22
      %p19 = scmp.ge.s32.totalorder %s18, 4
      %s25 = sphi 0, %s37
      %s26 = sphi 0, %s33
      %s27 = sphi 0, %s25
      %s28 = sphi 0, %s26
      %s29 = sphi 0, %s27
      %s30 = sphi 0, %s28
      %s42 = sphi 0, %s44
      %s45 = sphi 0, %s42
      %s46 = sphi 0, %s45
      %s62 = sphi 0, %s46
      %s74 = sphi 0, %s76
      %s77 = sphi 0, %s74
      %s78 = sphi 0, %s77
      %s94 = sphi 0, %s78
      %s102 = sphi 0, %s104
      %s105 = sphi 0, %s102
      %s106 = sphi 0, %s105
      %s122 = sphi 0, %s106
      %s134 = sphi 0, %s136
      %s137 = sphi 0, %s134
      %s138 = sphi 0, %s137
      %s154 = sphi 0, %s138
      %s162 = sphi 0, %s164
      %s165 = sphi 0, %s162
      %s166 = sphi 0, %s165
      %s182 = sphi 0, %s166
      %s190 = sphi 0, %s192
      %s193 = sphi 0, %s190
      %s194 = sphi 0, %s193
      %s210 = sphi 0, %s194
      %s214 = sphi 0, %s214
      %s216 = sphi 0, %s214
      %s217 = sphi 0, %s216
      %s231 = sphi 0, %s217
      %s235 = sphi 0, %s235
      %s237 = sphi 0, %s235
      %s238 = sphi 0, %s237
      %s252 = sphi 0, %s238
      %s256 = sphi 0, %s256
      %s258 = sphi 0, %s256
      %s259 = sphi 0, %s258
      %s273 = sphi 0, %s259
      %s281 = sphi 0, %s283
      %s284 = sphi 0, %s281
      %s285 = sphi 0, %s284
      %s301 = sphi 0, %s285
    $region4: #{conv_downsampler.1} parent=1 // loop_header_branch
      %21 = sbr.rel (%p19) target = $region8
    $region5: #{conv_downsampler.1} parent=1 // loop_body
      %s23 = ssub.s32 %s18, 1
      %s24 = ssub.s32 %s18, 2
      %s31 = sadd.s32 1, %s26
      %p32 = scmp.ge.s32.totalorder %s31, 1
      %s33 = scalar_select %p32, 0, %s31
      %s34 = sadd.s32 1, %s25
      %s35 = scalar_select %p32, %s34, %s25
      %p36 = scmp.ge.s32.totalorder %s35, 2
      %s37 = scalar_select %p36, 0, %s35
      %s38 = ssub.s32 %s25, %s37
      %s39 = ssub.s32 %s26, %s33
      %s40 = sor.u32 %s38, %s39
      %p41 = scmp.eq.s32.totalorder %s40, 0
      %s43 = sadd.s32 %s42, 1
      %s44 = scalar_select %p41, %s42, %s43
      %p47 = pneg %p41
      %p48 = scmp.eq.s32.totalorder %s18, 1
      %p49 = por %p47, %p48
      %p50 = scmp.ne.s32.totalorder %s42, %s45
      %p51 = scmp.eq.s32.totalorder %s18, 0
      %p52 = por %p50, %p51
      %p53 = scmp.ne.s32.totalorder %s42, %s45
      %p54 = scmp.eq.s32.totalorder %s23, 1
      %p55 = por %p53, %p54
      %p56 = scmp.ne.s32.totalorder %s45, %s46
      %p57 = scmp.eq.s32.totalorder %s23, 0
      %p58 = por %p56, %p57
      %p59 = scmp.ne.s32.totalorder %s45, %s46
      %p60 = scmp.eq.s32.totalorder %s24, 1
      %p61 = por %p59, %p60
      %p63 = scmp.ne.s32.totalorder %s46, %s62
      %p64 = scmp.eq.s32.totalorder %s24, 0
      %p65 = por %p63, %p64
      %s66 = smul.u32 %s26, 8
      %s67 = sadd.s32 %s66, 8
      %s68 = smul.u32 %s33, 8
      %s69 = sadd.s32 %s68, 8
      %s70 = ssub.s32 %s25, %s37
      %s71 = ssub.s32 %s67, %s69
      %s72 = sor.u32 %s70, %s71
      %p73 = scmp.eq.s32.totalorder %s72, 0
      %s75 = sadd.s32 %s74, 1
      %s76 = scalar_select %p73, %s74, %s75
      %p79 = pneg %p73
      %p80 = scmp.eq.s32.totalorder %s18, 1
      %p81 = por %p79, %p80
      %p82 = scmp.ne.s32.totalorder %s74, %s77
      %p83 = scmp.eq.s32.totalorder %s18, 0
      %p84 = por %p82, %p83
      %p85 = scmp.ne.s32.totalorder %s74, %s77
      %p86 = scmp.eq.s32.totalorder %s23, 1
      %p87 = por %p85, %p86
      %p88 = scmp.ne.s32.totalorder %s77, %s78
      %p89 = scmp.eq.s32.totalorder %s23, 0
      %p90 = por %p88, %p89
      %p91 = scmp.ne.s32.totalorder %s77, %s78
      %p92 = scmp.eq.s32.totalorder %s24, 1
      %p93 = por %p91, %p92
      %p95 = scmp.ne.s32.totalorder %s78, %s94
      %p96 = scmp.eq.s32.totalorder %s24, 0
      %p97 = por %p95, %p96
      %s98 = ssub.s32 %s25, %s37
      %s99 = ssub.s32 %s26, %s33
      %s100 = sor.u32 %s98, %s99
      %p101 = scmp.eq.s32.totalorder %s100, 0
      %s103 = sadd.s32 %s102, 1
      %s104 = scalar_select %p101, %s102, %s103
      %p107 = pneg %p101
      %p108 = scmp.eq.s32.totalorder %s18, 1
      %p109 = por %p107, %p108
      %p110 = scmp.ne.s32.totalorder %s102, %s105
      %p111 = scmp.eq.s32.totalorder %s18, 0
      %p112 = por %p110, %p111
      %p113 = scmp.ne.s32.totalorder %s102, %s105
      %p114 = scmp.eq.s32.totalorder %s23, 1
      %p115 = por %p113, %p114
      %p116 = scmp.ne.s32.totalorder %s105, %s106
      %p117 = scmp.eq.s32.totalorder %s23, 0
      %p118 = por %p116, %p117
      %p119 = scmp.ne.s32.totalorder %s105, %s106
      %p120 = scmp.eq.s32.totalorder %s24, 1
      %p121 = por %p119, %p120
      %p123 = scmp.ne.s32.totalorder %s106, %s122
      %p124 = scmp.eq.s32.totalorder %s24, 0
      %p125 = por %p123, %p124
      %s126 = smul.u32 %s26, 8
      %s127 = sadd.s32 %s126, 8
      %s128 = smul.u32 %s33, 8
      %s129 = sadd.s32 %s128, 8
      %s130 = ssub.s32 %s25, %s37
      %s131 = ssub.s32 %s127, %s129
      %s132 = sor.u32 %s130, %s131
      %p133 = scmp.eq.s32.totalorder %s132, 0
      %s135 = sadd.s32 %s134, 1
      %s136 = scalar_select %p133, %s134, %s135
      %p139 = pneg %p133
      %p140 = scmp.eq.s32.totalorder %s18, 1
      %p141 = por %p139, %p140
      %p142 = scmp.ne.s32.totalorder %s134, %s137
      %p143 = scmp.eq.s32.totalorder %s18, 0
      %p144 = por %p142, %p143
      %p145 = scmp.ne.s32.totalorder %s134, %s137
      %p146 = scmp.eq.s32.totalorder %s23, 1
      %p147 = por %p145, %p146
      %p148 = scmp.ne.s32.totalorder %s137, %s138
      %p149 = scmp.eq.s32.totalorder %s23, 0
      %p150 = por %p148, %p149
      %p151 = scmp.ne.s32.totalorder %s137, %s138
      %p152 = scmp.eq.s32.totalorder %s24, 1
      %p153 = por %p151, %p152
      %p155 = scmp.ne.s32.totalorder %s138, %s154
      %p156 = scmp.eq.s32.totalorder %s24, 0
      %p157 = por %p155, %p156
      %s158 = ssub.s32 %s25, %s37
      %s159 = ssub.s32 %s26, %s33
      %s160 = sor.u32 %s158, %s159
      %p161 = scmp.eq.s32.totalorder %s160, 0
      %s163 = sadd.s32 %s162, 1
      %s164 = scalar_select %p161, %s162, %s163
      %p167 = pneg %p161
      %p168 = scmp.eq.s32.totalorder %s18, 1
      %p169 = por %p167, %p168
      %p170 = scmp.ne.s32.totalorder %s162, %s165
      %p171 = scmp.eq.s32.totalorder %s18, 0
      %p172 = por %p170, %p171
      %p173 = scmp.ne.s32.totalorder %s162, %s165
      %p174 = scmp.eq.s32.totalorder %s23, 1
      %p175 = por %p173, %p174
      %p176 = scmp.ne.s32.totalorder %s165, %s166
      %p177 = scmp.eq.s32.totalorder %s23, 0
      %p178 = por %p176, %p177
      %p179 = scmp.ne.s32.totalorder %s165, %s166
      %p180 = scmp.eq.s32.totalorder %s24, 1
      %p181 = por %p179, %p180
      %p183 = scmp.ne.s32.totalorder %s166, %s182
      %p184 = scmp.eq.s32.totalorder %s24, 0
      %p185 = por %p183, %p184
      %s186 = ssub.s32 %s25, %s37
      %s187 = ssub.s32 %s26, %s33
      %s188 = sor.u32 %s186, %s187
      %p189 = scmp.eq.s32.totalorder %s188, 0
      %s191 = sadd.s32 %s190, 1
      %s192 = scalar_select %p189, %s190, %s191
      %p195 = pneg %p189
      %p196 = scmp.eq.s32.totalorder %s18, 1
      %p197 = por %p195, %p196
      %p198 = scmp.ne.s32.totalorder %s190, %s193
      %p199 = scmp.eq.s32.totalorder %s18, 0
      %p200 = por %p198, %p199
      %p201 = scmp.ne.s32.totalorder %s190, %s193
      %p202 = scmp.eq.s32.totalorder %s23, 1
      %p203 = por %p201, %p202
      %p204 = scmp.ne.s32.totalorder %s193, %s194
      %p205 = scmp.eq.s32.totalorder %s23, 0
      %p206 = por %p204, %p205
      %p207 = scmp.ne.s32.totalorder %s193, %s194
      %p208 = scmp.eq.s32.totalorder %s24, 1
      %p209 = por %p207, %p208
      %p211 = scmp.ne.s32.totalorder %s194, %s210
      %p212 = scmp.eq.s32.totalorder %s24, 0
      %p213 = por %p211, %p212
      %s215 = sadd.s32 %s214, 1
      %p218 = scmp.eq.s32.totalorder %s18, 1
      %p219 = scmp.ne.s32.totalorder %s214, %s216
      %p220 = scmp.eq.s32.totalorder %s18, 0
      %p221 = por %p219, %p220
      %p222 = scmp.ne.s32.totalorder %s214, %s216
      %p223 = scmp.eq.s32.totalorder %s23, 1
      %p224 = por %p222, %p223
      %p225 = scmp.ne.s32.totalorder %s216, %s217
      %p226 = scmp.eq.s32.totalorder %s23, 0
      %p227 = por %p225, %p226
      %p228 = scmp.ne.s32.totalorder %s216, %s217
      %p229 = scmp.eq.s32.totalorder %s24, 1
      %p230 = por %p228, %p229
      %p232 = scmp.ne.s32.totalorder %s217, %s231
      %p233 = scmp.eq.s32.totalorder %s24, 0
      %p234 = por %p232, %p233
      %s236 = sadd.s32 %s235, 1
      %p239 = scmp.eq.s32.totalorder %s18, 1
      %p240 = scmp.ne.s32.totalorder %s235, %s237
      %p241 = scmp.eq.s32.totalorder %s18, 0
      %p242 = por %p240, %p241
      %p243 = scmp.ne.s32.totalorder %s235, %s237
      %p244 = scmp.eq.s32.totalorder %s23, 1
      %p245 = por %p243, %p244
      %p246 = scmp.ne.s32.totalorder %s237, %s238
      %p247 = scmp.eq.s32.totalorder %s23, 0
      %p248 = por %p246, %p247
      %p249 = scmp.ne.s32.totalorder %s237, %s238
      %p250 = scmp.eq.s32.totalorder %s24, 1
      %p251 = por %p249, %p250
      %p253 = scmp.ne.s32.totalorder %s238, %s252
      %p254 = scmp.eq.s32.totalorder %s24, 0
      %p255 = por %p253, %p254
      %s257 = sadd.s32 %s256, 1
      %p260 = scmp.eq.s32.totalorder %s18, 1
      %p261 = scmp.ne.s32.totalorder %s256, %s258
      %p262 = scmp.eq.s32.totalorder %s18, 0
      %p263 = por %p261, %p262
      %p264 = scmp.ne.s32.totalorder %s256, %s258
      %p265 = scmp.eq.s32.totalorder %s23, 1
      %p266 = por %p264, %p265
      %p267 = scmp.ne.s32.totalorder %s258, %s259
      %p268 = scmp.eq.s32.totalorder %s23, 0
      %p269 = por %p267, %p268
      %p270 = scmp.ne.s32.totalorder %s258, %s259
      %p271 = scmp.eq.s32.totalorder %s24, 1
      %p272 = por %p270, %p271
      %p274 = scmp.ne.s32.totalorder %s259, %s273
      %p275 = scmp.eq.s32.totalorder %s24, 0
      %p276 = por %p274, %p275
      %s277 = ssub.s32 %s25, %s37
      %s278 = ssub.s32 %s26, %s33
      %s279 = sor.u32 %s277, %s278
      %p280 = scmp.eq.s32.totalorder %s279, 0
      %s282 = sadd.s32 %s281, 1
      %s283 = scalar_select %p280, %s281, %s282
      %p286 = pneg %p280
      %p287 = scmp.eq.s32.totalorder %s18, 1
      %p288 = por %p286, %p287
      %p289 = scmp.ne.s32.totalorder %s281, %s284
      %p290 = scmp.eq.s32.totalorder %s18, 0
      %p291 = por %p289, %p290
      %p292 = scmp.ne.s32.totalorder %s281, %s284
      %p293 = scmp.eq.s32.totalorder %s23, 1
      %p294 = por %p292, %p293
      %p295 = scmp.ne.s32.totalorder %s284, %s285
      %p296 = scmp.eq.s32.totalorder %s23, 0
      %p297 = por %p295, %p296
      %p298 = scmp.ne.s32.totalorder %s284, %s285
      %p299 = scmp.eq.s32.totalorder %s24, 1
      %p300 = por %p298, %p299
      %p302 = scmp.ne.s32.totalorder %s285, %s301
      %p303 = scmp.eq.s32.totalorder %s24, 0
      %p304 = por %p302, %p303
      %p305 = scmp.le.s32.totalorder 1, %s18
      %p306 = scmp.lt.s32.totalorder %s18, 3
      %p307 = pnand %p305, %p306
      %p308 = pneg %p307
      // Predicated region
      $region9: #{conv_downsampler.1} parent=5 // pred_check
        _
      $region10: #{conv_downsampler.1} parent=5 // pred_check_branch
        %310 = sbr.rel (%p307) target = $region12
      $region11: #{conv_downsampler.1} parent=5 // pred_region
        %s311 = ssub.s32 %s18, 1
        // Predicated region
        $region13: #{conv_downsampler.1} parent=11 // pred_check
          %p312 = pneg %p227
        $region14: #{conv_downsampler.1} parent=11 // pred_check_branch
          %314 = sbr.rel (%p312) target = $region16
        $region15: #{conv_downsampler.1} parent=11 // pred_region
          _
        $region16: #{conv_downsampler.1} parent=11 // pred_fallthru
          _
        // Predicated region
        $region17: #{conv_downsampler.1} parent=11 // pred_check
          %p315 = pneg %p248
        $region18: #{conv_downsampler.1} parent=11 // pred_check_branch
          %317 = sbr.rel (%p315) target = $region20
        $region19: #{conv_downsampler.1} parent=11 // pred_region
          _
        $region20: #{conv_downsampler.1} parent=11 // pred_fallthru
          _
        // Predicated region
        $region21: #{conv_downsampler.1} parent=11 // pred_check
          %p318 = pneg %p269
        $region22: #{conv_downsampler.1} parent=11 // pred_check_branch
          %320 = sbr.rel (%p318) target = $region24
        $region23: #{conv_downsampler.1} parent=11 // pred_region
          _
        $region24: #{conv_downsampler.1} parent=11 // pred_fallthru
          _
      $region12: #{conv_downsampler.1} parent=5 // pred_fallthru
        _
      %p321 = scmp.lt.s32.totalorder %s18, 2
      // Predicated region
      $region25: #{conv_downsampler.1} parent=5 // pred_check
        %p322 = pneg %p321
      $region26: #{conv_downsampler.1} parent=5 // pred_check_branch
        %324 = sbr.rel (%p322) target = $region28
      $region27: #{conv_downsampler.1} parent=5 // pred_region
        // Predicated region
        $region29: #{conv_downsampler.1} parent=27 // pred_check
          %p325 = pneg %p52
        $region30: #{conv_downsampler.1} parent=27 // pred_check_branch
          %327 = sbr.rel (%p325) target = $region32
        $region31: #{conv_downsampler.1} parent=27 // pred_region
          %s328 = smul.u32 8, %s26
          %s329 = ssub.s32 9, %s328
          %p330 = scmp.lt.s32.totalorder %s329, 8
          %s331 = scalar_select %p330, %s329, 8
          %s332 = smul.u32 64, %s331
          %s333 = smul.u32 %s332, 2
          %p334 = scmp.lt.s32.totalorder %s25, 1
          %s335 = scalar_select %p334, %s25, 1
          %p336 = scmp.lt.s32.totalorder %s328, 8
          %s337 = scalar_select %p336, %s328, 8
          %s338 = smul.addr %s337, 2
          %s339 = smul.addr %s335, 18
          %s340 = sadd.s32 %s338, %s339
          %s341 = smul.addr %s340, 4
          %s342 = scalar_lea.vmem %s0, %s341
          %s343 = smul.u32 8, %s26
          %s344 = ssub.s32 9, %s343
          %p345 = scmp.lt.s32.totalorder %s344, 8
          %s346 = scalar_select %p345, %s344, 8
          %s347 = smul.u32 64, %s346
          %s348 = smul.u32 %s347, 2
        $region32: #{conv_downsampler.1} parent=27 // pred_fallthru
          _
        // Predicated region
        $region33: #{conv_downsampler.1} parent=27 // pred_check
          %p349 = pneg %p84
        $region34: #{conv_downsampler.1} parent=27 // pred_check_branch
          %351 = sbr.rel (%p349) target = $region36
        $region35: #{conv_downsampler.1} parent=27 // pred_region
          %s352 = smul.u32 %s26, 8
          %s353 = sadd.s32 %s352, 8
          %p354 = scmp.lt.s32.totalorder %s25, 1
          %s355 = scalar_select %p354, %s25, 1
          %p356 = scmp.lt.s32.totalorder %s353, 8
          %s357 = scalar_select %p356, %s353, 8
          %s358 = smul.addr %s357, 2
          %s359 = smul.addr %s355, 18
          %s360 = sadd.s32 %s358, %s359
          %s361 = smul.addr %s360, 4
          %s362 = scalar_lea.vmem %s1, %s361
          %s363 = smul.u32 %s26, 8
          %s364 = sadd.s32 %s363, 8
        $region36: #{conv_downsampler.1} parent=27 // pred_fallthru
          _
        // Predicated region
        $region37: #{conv_downsampler.1} parent=27 // pred_check
          %p365 = pneg %p112
        $region38: #{conv_downsampler.1} parent=27 // pred_check_branch
          %367 = sbr.rel (%p365) target = $region40
        $region39: #{conv_downsampler.1} parent=27 // pred_region
          %s368 = smul.u32 8, %s26
          %s369 = ssub.s32 9, %s368
          %p370 = scmp.lt.s32.totalorder %s369, 8
          %s371 = scalar_select %p370, %s369, 8
          %s372 = smul.u32 64, %s371
          %p373 = scmp.lt.s32.totalorder %s25, 1
          %s374 = scalar_select %p373, %s25, 1
          %p375 = scmp.lt.s32.totalorder %s368, 8
          %s376 = scalar_select %p375, %s368, 8
          %s377 = smul.addr %s374, 9
          %s378 = sadd.s32 %s376, %s377
          %s379 = smul.addr %s378, 4
          %s380 = scalar_lea.vmem %s2, %s379
          %s381 = smul.u32 8, %s26
          %s382 = ssub.s32 9, %s381
          %p383 = scmp.lt.s32.totalorder %s382, 8
          %s384 = scalar_select %p383, %s382, 8
          %s385 = smul.u32 64, %s384
        $region40: #{conv_downsampler.1} parent=27 // pred_fallthru
          _
        // Predicated region
        $region41: #{conv_downsampler.1} parent=27 // pred_check
          %p386 = pneg %p144
        $region42: #{conv_downsampler.1} parent=27 // pred_check_branch
          %388 = sbr.rel (%p386) target = $region44
        $region43: #{conv_downsampler.1} parent=27 // pred_region
          %s389 = smul.u32 %s26, 8
          %s390 = sadd.s32 %s389, 8
          %p391 = scmp.lt.s32.totalorder %s25, 1
          %s392 = scalar_select %p391, %s25, 1
          %p393 = scmp.lt.s32.totalorder %s390, 8
          %s394 = scalar_select %p393, %s390, 8
          %s395 = smul.addr %s392, 9
          %s396 = sadd.s32 %s394, %s395
          %s397 = smul.addr %s396, 4
          %s398 = scalar_lea.vmem %s3, %s397
          %s399 = smul.u32 %s26, 8
          %s400 = sadd.s32 %s399, 8
        $region44: #{conv_downsampler.1} parent=27 // pred_fallthru
          _
        // Predicated region
        $region45: #{conv_downsampler.1} parent=27 // pred_check
          %p401 = pneg %p172
        $region46: #{conv_downsampler.1} parent=27 // pred_check_branch
          %403 = sbr.rel (%p401) target = $region48
        $region47: #{conv_downsampler.1} parent=27 // pred_region
          %s404 = smul.u32 8, %s26
          %p405 = scmp.lt.s32.totalorder %s25, 1
          %s406 = scalar_select %p405, %s25, 1
          %p407 = scmp.lt.s32.totalorder %s404, 7
          %s408 = scalar_select %p407, %s404, 7
          %s409 = smul.addr %s408, 2
          %s410 = smul.addr %s406, 16
          %s411 = sadd.s32 %s409, %s410
          %s412 = smul.addr %s411, 4
          %s413 = scalar_lea.vmem %s4, %s412
          %s414 = smul.u32 8, %s26
        $region48: #{conv_downsampler.1} parent=27 // pred_fallthru
          _
        // Predicated region
        $region49: #{conv_downsampler.1} parent=27 // pred_check
          %p415 = pneg %p200
        $region50: #{conv_downsampler.1} parent=27 // pred_check_branch
          %417 = sbr.rel (%p415) target = $region52
        $region51: #{conv_downsampler.1} parent=27 // pred_region
          %s418 = smul.u32 8, %s26
          %p419 = scmp.lt.s32.totalorder %s25, 1
          %s420 = scalar_select %p419, %s25, 1
          %p421 = scmp.lt.s32.totalorder %s418, 7
          %s422 = scalar_select %p421, %s418, 7
          %s423 = smul.addr %s420, 8
          %s424 = sadd.s32 %s422, %s423
          %s425 = smul.addr %s424, 4
          %s426 = scalar_lea.vmem %s5, %s425
          %s427 = smul.u32 8, %s26
        $region52: #{conv_downsampler.1} parent=27 // pred_fallthru
          _
      $region28: #{conv_downsampler.1} parent=5 // pred_fallthru
        _
      %p428 = scmp.le.s32.totalorder 1, %s18
      %p429 = scmp.lt.s32.totalorder %s18, 3
      %p430 = pnand %p428, %p429
      %p431 = pneg %p430
      // Predicated region
      $region53: #{conv_downsampler.1} parent=5 // pred_check
        _
      $region54: #{conv_downsampler.1} parent=5 // pred_check_branch
        %433 = sbr.rel (%p430) target = $region56
      $region55: #{conv_downsampler.1} parent=5 // pred_region
        %s434 = ssub.s32 %s18, 1
        %s435 = smul.u32 8, %s28
        %s436 = ssub.s32 9, %s435
        %p437 = scmp.lt.s32.totalorder %s436, 8
        %s438 = scalar_select %p437, %s436, 8
        %s439 = smul.u32 64, %s438
        %s440 = smul.u32 %s439, 2
        %p441 = scmp.lt.s32.totalorder %s27, 1
        %s442 = scalar_select %p441, %s27, 1
        %p443 = scmp.lt.s32.totalorder %s435, 8
        %s444 = scalar_select %p443, %s435, 8
        %s445 = smul.addr %s444, 2
        %s446 = smul.addr %s442, 18
        %s447 = sadd.s32 %s445, %s446
        %s448 = smul.addr %s447, 4
        %s449 = scalar_lea.vmem %s0, %s448
        %p450 = pneg %p58
        %p451 = pneg %p55
        %s452 = smul.u32 %s28, 8
        %s453 = sadd.s32 %s452, 8
        %p454 = scmp.lt.s32.totalorder %s27, 1
        %s455 = scalar_select %p454, %s27, 1
        %p456 = scmp.lt.s32.totalorder %s453, 8
        %s457 = scalar_select %p456, %s453, 8
        %s458 = smul.addr %s457, 2
        %s459 = smul.addr %s455, 18
        %s460 = sadd.s32 %s458, %s459
        %s461 = smul.addr %s460, 4
        %s462 = scalar_lea.vmem %s1, %s461
        %p463 = pneg %p90
        %p464 = pneg %p87
        %s465 = smul.u32 8, %s28
        %s466 = ssub.s32 9, %s465
        %p467 = scmp.lt.s32.totalorder %s466, 8
        %s468 = scalar_select %p467, %s466, 8
        %s469 = smul.u32 64, %s468
        %p470 = scmp.lt.s32.totalorder %s27, 1
        %s471 = scalar_select %p470, %s27, 1
        %p472 = scmp.lt.s32.totalorder %s465, 8
        %s473 = scalar_select %p472, %s465, 8
        %s474 = smul.addr %s471, 9
        %s475 = sadd.s32 %s473, %s474
        %s476 = smul.addr %s475, 4
        %s477 = scalar_lea.vmem %s2, %s476
        %p478 = pneg %p118
        %p479 = pneg %p115
        %s480 = smul.u32 %s28, 8
        %s481 = sadd.s32 %s480, 8
        %p482 = scmp.lt.s32.totalorder %s27, 1
        %s483 = scalar_select %p482, %s27, 1
        %p484 = scmp.lt.s32.totalorder %s481, 8
        %s485 = scalar_select %p484, %s481, 8
        %s486 = smul.addr %s483, 9
        %s487 = sadd.s32 %s485, %s486
        %s488 = smul.addr %s487, 4
        %s489 = scalar_lea.vmem %s3, %s488
        %p490 = pneg %p150
        %p491 = pneg %p147
        %s492 = smul.u32 8, %s28
        %p493 = scmp.lt.s32.totalorder %s27, 1
        %s494 = scalar_select %p493, %s27, 1
        %p495 = scmp.lt.s32.totalorder %s492, 7
        %s496 = scalar_select %p495, %s492, 7
        %s497 = smul.addr %s496, 2
        %s498 = smul.addr %s494, 16
        %s499 = sadd.s32 %s497, %s498
        %s500 = smul.addr %s499, 4
        %s501 = scalar_lea.vmem %s4, %s500
        %p502 = pneg %p178
        %p503 = pneg %p175
        %s504 = smul.u32 8, %s28
        %p505 = scmp.lt.s32.totalorder %s27, 1
        %s506 = scalar_select %p505, %s27, 1
        %p507 = scmp.lt.s32.totalorder %s504, 7
        %s508 = scalar_select %p507, %s504, 7
        %s509 = smul.addr %s506, 8
        %s510 = sadd.s32 %s508, %s509
        %s511 = smul.addr %s510, 4
        %s512 = scalar_lea.vmem %s5, %s511
        %p513 = pneg %p206
        %p514 = pneg %p203
        %p515 = pneg %p227
        %p516 = pneg %p224
        %p517 = pneg %p248
        %p518 = pneg %p245
        %p519 = pneg %p269
        %p520 = pneg %p266
        %p521 = pneg %p297
        %p522 = pneg %p294
        %s523 = sand.u32 %s284, 1
        %s524 = scalar_lea.sflag [#allocation3], %s523
        %s525 = sand.u32 %s284, 1
        %s526 = smul.addr %s525, 64
        %s527 = scalar_lea.vmem [#allocation2], %s526
        %s528 = smul.u32 8, %s28
        %s529 = ssub.s32 9, %s528
        %p530 = scmp.lt.s32.totalorder %s529, 8
        %s531 = scalar_select %p530, %s529, 8
        %s532 = smul.u32 64, %s531
        %s533 = smul.u32 %s532, 2
        %p534 = scmp.lt.s32.totalorder %s27, 1
        %s535 = scalar_select %p534, %s27, 1
        %p536 = scmp.lt.s32.totalorder %s528, 8
        %s537 = scalar_select %p536, %s528, 8
        %s538 = smul.addr %s537, 2
        %s539 = smul.addr %s535, 18
        %s540 = sadd.s32 %s538, %s539
        %s541 = smul.addr %s540, 4
        %s542 = scalar_lea.vmem %s0, %s541
        %s543 = smul.u32 8, %s28
        %s544 = ssub.s32 9, %s543
        %p545 = scmp.lt.s32.totalorder %s544, 8
        %s546 = scalar_select %p545, %s544, 8
        %s547 = smul.u32 64, %s546
        %s548 = smul.u32 %s547, 2
        %s549 = smul.u32 %s28, 8
        %s550 = sadd.s32 %s549, 8
        %p551 = scmp.lt.s32.totalorder %s27, 1
        %s552 = scalar_select %p551, %s27, 1
        %p553 = scmp.lt.s32.totalorder %s550, 8
        %s554 = scalar_select %p553, %s550, 8
        %s555 = smul.addr %s554, 2
        %s556 = smul.addr %s552, 18
        %s557 = sadd.s32 %s555, %s556
        %s558 = smul.addr %s557, 4
        %s559 = scalar_lea.vmem %s1, %s558
        %s560 = smul.u32 %s28, 8
        %s561 = sadd.s32 %s560, 8
        %s562 = smul.u32 8, %s28
        %s563 = ssub.s32 9, %s562
        %p564 = scmp.lt.s32.totalorder %s563, 8
        %s565 = scalar_select %p564, %s563, 8
        %s566 = smul.u32 64, %s565
        %p567 = scmp.lt.s32.totalorder %s27, 1
        %s568 = scalar_select %p567, %s27, 1
        %p569 = scmp.lt.s32.totalorder %s562, 8
        %s570 = scalar_select %p569, %s562, 8
        %s571 = smul.addr %s568, 9
        %s572 = sadd.s32 %s570, %s571
        %s573 = smul.addr %s572, 4
        %s574 = scalar_lea.vmem %s2, %s573
        %s575 = smul.u32 8, %s28
        %s576 = ssub.s32 9, %s575
        %p577 = scmp.lt.s32.totalorder %s576, 8
        %s578 = scalar_select %p577, %s576, 8
        %s579 = smul.u32 64, %s578
        %s580 = smul.u32 %s28, 8
        %s581 = sadd.s32 %s580, 8
        %p582 = scmp.lt.s32.totalorder %s27, 1
        %s583 = scalar_select %p582, %s27, 1
        %p584 = scmp.lt.s32.totalorder %s581, 8
        %s585 = scalar_select %p584, %s581, 8
        %s586 = smul.addr %s583, 9
        %s587 = sadd.s32 %s585, %s586
        %s588 = smul.addr %s587, 4
        %s589 = scalar_lea.vmem %s3, %s588
        %s590 = smul.u32 %s28, 8
        %s591 = sadd.s32 %s590, 8
        %s592 = smul.u32 8, %s28
        %p593 = scmp.lt.s32.totalorder %s27, 1
        %s594 = scalar_select %p593, %s27, 1
        %p595 = scmp.lt.s32.totalorder %s592, 7
        %s596 = scalar_select %p595, %s592, 7
        %s597 = smul.addr %s596, 2
        %s598 = smul.addr %s594, 16
        %s599 = sadd.s32 %s597, %s598
        %s600 = smul.addr %s599, 4
        %s601 = scalar_lea.vmem %s4, %s600
        %s602 = smul.u32 8, %s28
        %s603 = smul.u32 8, %s28
        %p604 = scmp.lt.s32.totalorder %s27, 1
        %s605 = scalar_select %p604, %s27, 1
        %p606 = scmp.lt.s32.totalorder %s603, 7
        %s607 = scalar_select %p606, %s603, 7
        %s608 = smul.addr %s605, 8
        %s609 = sadd.s32 %s607, %s608
        %s610 = smul.addr %s609, 4
        %s611 = scalar_lea.vmem %s5, %s610
        %s612 = smul.u32 8, %s28
        %s613 = smul.u32 8, %s28
        %v615 = vld [vmem:[%s542] sm:$0xf]
        %v616 = vld [vmem:[%s542 + $0x4] sm:$0x1]
        %v617 = vld [vmem:[%s542 + $0x8] sm:$0xf]
        %v618 = vld [vmem:[%s542 + $0xc] sm:$0x1]
        %v619 = vld [vmem:[%s542 + $0x10] sm:$0xf]
        %v620 = vld [vmem:[%s542 + $0x14] sm:$0x1]
        %v621 = vld [vmem:[%s542 + $0x18] sm:$0xf]
        %v622 = vld [vmem:[%s542 + $0x1c] sm:$0x1]
        %v623 = vld [vmem:[%s542 + $0x20] sm:$0xf]
        %v624 = vld [vmem:[%s542 + $0x24] sm:$0x1]
        %v625 = vld [vmem:[%s542 + $0x28] sm:$0xf]
        %v626 = vld [vmem:[%s542 + $0x2c] sm:$0x1]
        %v627 = vld [vmem:[%s542 + $0x30] sm:$0xf]
        %v628 = vld [vmem:[%s542 + $0x34] sm:$0x1]
        %v629 = vld [vmem:[%s542 + $0x38] sm:$0xf]
        %v630 = vld [vmem:[%s542 + $0x3c] sm:$0x1]
        %v631 = vld [vmem:[%s559] sm:$0xf]
        %v632 = vld [vmem:[%s559 + $0x4] sm:$0x1]
        %v633 = vld [vmem:[%s574] sm:$0xf]
        %v634 = vld [vmem:[%s574 + $0x4] sm:$0xf]
        %v635 = vld [vmem:[%s574 + $0x8] sm:$0xf]
        %v636 = vld [vmem:[%s574 + $0xc] sm:$0xf]
        %v637 = vld [vmem:[%s574 + $0x10] sm:$0xf]
        %v638 = vld [vmem:[%s574 + $0x14] sm:$0xf]
        %v639 = vld [vmem:[%s574 + $0x18] sm:$0xf]
        %v640 = vld [vmem:[%s574 + $0x1c] sm:$0xf]
        %v641 = vld [vmem:[%s589] sm:$0xf]
        %v642 = vld [vmem:[%s601] sm:$0xf]
        %v643 = vld [vmem:[%s601 + $0x4] sm:$0x1]
        %v644 = vld [vmem:[%s601 + $0x8] sm:$0xf]
        %v645 = vld [vmem:[%s601 + $0xc] sm:$0x1]
        %v646 = vld [vmem:[%s601 + $0x10] sm:$0xf]
        %v647 = vld [vmem:[%s601 + $0x14] sm:$0x1]
        %v648 = vld [vmem:[%s601 + $0x18] sm:$0xf]
        %v649 = vld [vmem:[%s601 + $0x1c] sm:$0x1]
        %v650 = vld [vmem:[%s601 + $0x20] sm:$0xf]
        %v651 = vld [vmem:[%s601 + $0x24] sm:$0x1]
        %v652 = vld [vmem:[%s601 + $0x28] sm:$0xf]
        %v653 = vld [vmem:[%s601 + $0x2c] sm:$0x1]
        %v654 = vld [vmem:[%s601 + $0x30] sm:$0xf]
        %v655 = vld [vmem:[%s601 + $0x34] sm:$0x1]
        %v656 = vld [vmem:[%s601 + $0x38] sm:$0xf]
        %v657 = vld [vmem:[%s601 + $0x3c] sm:$0x1]
        %v658 = vld [vmem:[%s611] sm:$0xf]
        %v659 = vld [vmem:[%s611 + $0x4] sm:$0xf]
        %v660 = vld [vmem:[%s611 + $0x8] sm:$0xf]
        %v661 = vld [vmem:[%s611 + $0xc] sm:$0xf]
        %v662 = vld [vmem:[%s611 + $0x10] sm:$0xf]
        %v663 = vld [vmem:[%s611 + $0x14] sm:$0xf]
        %v664 = vld [vmem:[%s611 + $0x18] sm:$0xf]
        %v665 = vld [vmem:[%s611 + $0x1c] sm:$0xf]
        %v666 = vld [vmem:[%s6] sm:$0x3]
        %s667 = scalar_lea.vmem %s6, 2
        %v668 = vld [vmem:[%s667] sm:$0x3]
        %v677 = vunpack.c.l.b16 %v633
        %v678 = vunpack.c.l.b16 %v634
        %v679 = vunpack.c.l.b16 %v635
        %v680 = vunpack.c.l.b16 %v636
        %v681 = vunpack.c.l.b16 %v637
        %v682 = vunpack.c.l.b16 %v638
        %v683 = vunpack.c.l.b16 %v639
        %v684 = vunpack.c.l.b16 %v640
        %v685 = vpack.c.b16 %v678, %v677
        %v686 = vpack.c.b16 %v680, %v679
        %v687 = vpack.c.b16 %v682, %v681
        %v688 = vpack.c.b16 %v684, %v683
        %vm689 = vcmask 31744
        %v691 = vsel %vm689, %v685, 0
        %v694 = vsel %vm689, %v686, 0
        %v697 = vsel %vm689, %v687, 0
        %v700 = vsel %vm689, %v688, 0
        %vm702 = vcmask 1041408
        %v704 = vsel %vm702, %v668, 0
        %706 = vmatprep.subr.bf16.mxu0 0
        %707 = vmatpush1.bf16.msra.mxu0 %v704
        %708 = vmatprep.subr.bf16.mxu0 0
        %709 = vmatpush1.bf16.msra.mxu0 0
        %710 = vmatprep.subr.bf16.mxu0 0
        %711 = vmatpush1.bf16.msra.mxu0 0
        %712 = vmatprep.subr.bf16.mxu0 0
        %713 = vmatpush1.bf16.msra.mxu0 0
        %714 = vmatprep.subr.bf16.mxu0 0
        %715 = vmatpush1.bf16.msra.mxu0 0
        %716 = vmatprep.subr.bf16.mxu0 0
        %717 = vmatpush1.bf16.msra.mxu0 0
        %718 = vmatprep.subr.bf16.mxu0 0
        %719 = vmatpush1.bf16.msra.mxu0 0
        %720 = vmatprep.subr.bf16.mxu0 0
        %721 = vmatpush1.bf16.msra.mxu0 0
        %722 = vmatprep.subr.bf16.mxu0 0
        %723 = vmatpush1.bf16.msra.mxu0 0
        %724 = vmatprep.subr.bf16.mxu0 0
        %725 = vmatpush1.bf16.msra.mxu0 0
        %726 = vmatprep.subr.bf16.mxu0 0
        %727 = vmatpush1.bf16.msra.mxu0 0
        %728 = vmatprep.subr.bf16.mxu0 0
        %729 = vmatpush1.bf16.msra.mxu0 0
        %730 = vmatprep.subr.bf16.mxu0 0
        %731 = vmatpush1.bf16.msra.mxu0 0
        %732 = vmatprep.subr.bf16.mxu0 0
        %733 = vmatpush1.bf16.msra.mxu0 0
        %734 = vmatprep.subr.bf16.mxu0 0
        %735 = vmatpush1.bf16.msra.mxu0 0
        %736 = vmatprep.subr.bf16.mxu0 0
        %737 = vmatpush1.bf16.msra.mxu0 0
        %738 = vmatprep.mubr.bf16.mxu0 0
        %739 = vmatmul.mubr.bf16.gmra.mrb[0].mxu0 %v691
        %v740 = vpop.f32.mrb[0].mxu0
        %v741 = vadd.f32 0.0, %v740
        %v742 = vpop.f32.mrb[0].mxu0
        %v743 = vpop.f32.mrb[0].mxu0
        %v744 = vadd.f32 0.0, %v743
        %v745 = vpop.f32.mrb[0].mxu0
        %746 = vmatprep.mubr.bf16.mxu0 0
        %747 = vmatmul.mubr.bf16.gmra.mrb[0].mxu0 %v694
        %v748 = vpop.f32.mrb[0].mxu0
        %v749 = vadd.f32 0.0, %v748
        %v750 = vpop.f32.mrb[0].mxu0
        %v751 = vpop.f32.mrb[0].mxu0
        %v752 = vadd.f32 0.0, %v751
        %v753 = vpop.f32.mrb[0].mxu0
        %754 = vmatprep.mubr.bf16.mxu0 0
        %755 = vmatmul.mubr.bf16.gmra.mrb[0].mxu0 %v697
        %v756 = vpop.f32.mrb[0].mxu0
        %v757 = vadd.f32 0.0, %v756
        %v758 = vpop.f32.mrb[0].mxu0
        %v759 = vpop.f32.mrb[0].mxu0
        %v760 = vadd.f32 0.0, %v759
        %v761 = vpop.f32.mrb[0].mxu0
        %762 = vmatprep.mubr.bf16.mxu0 0
        %763 = vmatmul.mubr.bf16.gmra.mrb[0].mxu0 %v700
        %v764 = vpop.f32.mrb[0].mxu0
        %v765 = vadd.f32 0.0, %v764
        %v766 = vpop.f32.mrb[0].mxu0
        %v767 = vpop.f32.mrb[0].mxu0
        %v768 = vadd.f32 0.0, %v767
        %v769 = vpop.f32.mrb[0].mxu0
        %770 = vdwg.mxu0
        %v779 = vunpack.c.l.b16 %v615
        %v780 = vunpack.c.l.b16 %v617
        %v781 = vunpack.c.l.b16 %v619
        %v782 = vunpack.c.l.b16 %v621
        %v783 = vunpack.c.l.b16 %v623
        %v784 = vunpack.c.l.b16 %v625
        %v785 = vunpack.c.l.b16 %v627
        %v786 = vunpack.c.l.b16 %v629
        %v787 = vpack.c.b16 %v780, %v779
        %v788 = vpack.c.b16 %v782, %v781
        %v789 = vpack.c.b16 %v784, %v783
        %v790 = vpack.c.b16 %v786, %v785
        %v792 = vsel %vm689, %v787, 0
        %v795 = vsel %vm689, %v788, 0
        %v798 = vsel %vm689, %v789, 0
        %v801 = vsel %vm689, %v790, 0
        %v804 = vsel %vm702, %v666, 0
        %806 = vmatprep.subr.bf16.mxu0 0
        %807 = vmatpush1.bf16.msra.mxu0 %v804
        %808 = vmatprep.subr.bf16.mxu0 0
        %809 = vmatpush1.bf16.msra.mxu0 0
        %810 = vmatprep.subr.bf16.mxu0 0
        %811 = vmatpush1.bf16.msra.mxu0 0
        %812 = vmatprep.subr.bf16.mxu0 0
        %813 = vmatpush1.bf16.msra.mxu0 0
        %814 = vmatprep.subr.bf16.mxu0 0
        %815 = vmatpush1.bf16.msra.mxu0 0
        %816 = vmatprep.subr.bf16.mxu0 0
        %817 = vmatpush1.bf16.msra.mxu0 0
        %818 = vmatprep.subr.bf16.mxu0 0
        %819 = vmatpush1.bf16.msra.mxu0 0
        %820 = vmatprep.subr.bf16.mxu0 0
        %821 = vmatpush1.bf16.msra.mxu0 0
        %822 = vmatprep.subr.bf16.mxu0 0
        %823 = vmatpush1.bf16.msra.mxu0 0
        %824 = vmatprep.subr.bf16.mxu0 0
        %825 = vmatpush1.bf16.msra.mxu0 0
        %826 = vmatprep.subr.bf16.mxu0 0
        %827 = vmatpush1.bf16.msra.mxu0 0
        %828 = vmatprep.subr.bf16.mxu0 0
        %829 = vmatpush1.bf16.msra.mxu0 0
        %830 = vmatprep.subr.bf16.mxu0 0
        %831 = vmatpush1.bf16.msra.mxu0 0
        %832 = vmatprep.subr.bf16.mxu0 0
        %833 = vmatpush1.bf16.msra.mxu0 0
        %834 = vmatprep.subr.bf16.mxu0 0
        %835 = vmatpush1.bf16.msra.mxu0 0
        %836 = vmatprep.subr.bf16.mxu0 0
        %837 = vmatpush1.bf16.msra.mxu0 0
        %838 = vmatprep.mubr.bf16.mxu0 0
        %839 = vmatmul.mubr.bf16.gmra.mrb[0].mxu0 %v792
        %v840 = vpop.f32.mrb[0].mxu0
        %v841 = vadd.f32 %v741, %v840
        %v842 = vpop.f32.mrb[0].mxu0
        %v843 = vpop.f32.mrb[0].mxu0
        %v844 = vadd.f32 %v744, %v843
        %v845 = vpop.f32.mrb[0].mxu0
        %846 = vmatprep.mubr.bf16.mxu0 0
        %847 = vmatmul.mubr.bf16.gmra.mrb[0].mxu0 %v795
        %v848 = vpop.f32.mrb[0].mxu0
        %v849 = vadd.f32 %v749, %v848
        %v850 = vpop.f32.mrb[0].mxu0
        %v851 = vpop.f32.mrb[0].mxu0
        %v852 = vadd.f32 %v752, %v851
        %v853 = vpop.f32.mrb[0].mxu0
        %854 = vmatprep.mubr.bf16.mxu0 0
        %855 = vmatmul.mubr.bf16.gmra.mrb[0].mxu0 %v798
        %v856 = vpop.f32.mrb[0].mxu0
        %v857 = vadd.f32 %v757, %v856
        %v858 = vpop.f32.mrb[0].mxu0
        %v859 = vpop.f32.mrb[0].mxu0
        %v860 = vadd.f32 %v760, %v859
        %v861 = vpop.f32.mrb[0].mxu0
        %862 = vmatprep.mubr.bf16.mxu0 0
        %863 = vmatmul.mubr.bf16.gmra.mrb[0].mxu0 %v801
        %v864 = vpop.f32.mrb[0].mxu0
        %v865 = vadd.f32 %v765, %v864
        %v866 = vpop.f32.mrb[0].mxu0
        %v867 = vpop.f32.mrb[0].mxu0
        %v868 = vadd.f32 %v768, %v867
        %v869 = vpop.f32.mrb[0].mxu0
        %870 = vdwg.mxu0
        %vm871 = vsmask.f32 3328
        %vm872 = vsmask.f32 7440
        %vm873 = vmor %vm871, %vm872
        %v875 = vshrl.u32 %v615, 16
        %v877 = vrot.slane %v875, 4
        %v878 = vshll.u32 %v615, 16
        %v880 = vrot.slane %v878, 5
        %v881 = vor.u32 %v877, %v880
        %v882 = vrot.slane %v881, 4
        %v884 = vshll.u32 %v616, 16
        %v886 = vrot.slane %v884, 5
        %v887 = vsel %vm873, %v882, %v886
        %v889 = vshrl.u32 %v617, 16
        %v891 = vrot.slane %v889, 4
        %v892 = vshll.u32 %v617, 16
        %v894 = vrot.slane %v892, 5
        %v895 = vor.u32 %v891, %v894
        %v896 = vrot.slane %v895, 4
        %v898 = vshll.u32 %v618, 16
        %v900 = vrot.slane %v898, 5
        %v901 = vsel %vm873, %v896, %v900
        %v903 = vshrl.u32 %v619, 16
        %v905 = vrot.slane %v903, 4
        %v906 = vshll.u32 %v619, 16
        %v908 = vrot.slane %v906, 5
        %v909 = vor.u32 %v905, %v908
        %v910 = vrot.slane %v909, 4
        %v912 = vshll.u32 %v620, 16
        %v914 = vrot.slane %v912, 5
        %v915 = vsel %vm873, %v910, %v914
        %v917 = vshrl.u32 %v621, 16
        %v919 = vrot.slane %v917, 4
        %v920 = vshll.u32 %v621, 16
        %v922 = vrot.slane %v920, 5
        %v923 = vor.u32 %v919, %v922
        %v924 = vrot.slane %v923, 4
        %v926 = vshll.u32 %v622, 16
        %v928 = vrot.slane %v926, 5
        %v929 = vsel %vm873, %v924, %v928
        %v931 = vshrl.u32 %v623, 16
        %v933 = vrot.slane %v931, 4
        %v934 = vshll.u32 %v623, 16
        %v936 = vrot.slane %v934, 5
        %v937 = vor.u32 %v933, %v936
        %v938 = vrot.slane %v937, 4
        %v940 = vshll.u32 %v624, 16
        %v942 = vrot.slane %v940, 5
        %v943 = vsel %vm873, %v938, %v942
        %v945 = vshrl.u32 %v625, 16
        %v947 = vrot.slane %v945, 4
        %v948 = vshll.u32 %v625, 16
        %v950 = vrot.slane %v948, 5
        %v951 = vor.u32 %v947, %v950
        %v952 = vrot.slane %v951, 4
        %v954 = vshll.u32 %v626, 16
        %v956 = vrot.slane %v954, 5
        %v957 = vsel %vm873, %v952, %v956
        %v959 = vshrl.u32 %v627, 16
        %v961 = vrot.slane %v959, 4
        %v962 = vshll.u32 %v627, 16
        %v964 = vrot.slane %v962, 5
        %v965 = vor.u32 %v961, %v964
        %v966 = vrot.slane %v965, 4
        %v968 = vshll.u32 %v628, 16
        %v970 = vrot.slane %v968, 5
        %v971 = vsel %vm873, %v966, %v970
        %v973 = vshrl.u32 %v629, 16
        %v975 = vrot.slane %v973, 4
        %v976 = vshll.u32 %v629, 16
        %v978 = vrot.slane %v976, 5
        %v979 = vor.u32 %v975, %v978
        %v980 = vrot.slane %v979, 4
        %v982 = vshll.u32 %v630, 16
        %v984 = vrot.slane %v982, 5
        %v985 = vsel %vm873, %v980, %v984
        %s986 = scalar_lea.vmem %s6, 4
        %v987 = vld [vmem:[%s986] sm:$0x3]
        %v988 = vunpack.c.l.b16 %v887
        %v989 = vunpack.c.l.b16 %v901
        %v990 = vunpack.c.l.b16 %v915
        %v991 = vunpack.c.l.b16 %v929
        %v992 = vunpack.c.l.b16 %v943
        %v993 = vunpack.c.l.b16 %v957
        %v994 = vunpack.c.l.b16 %v971
        %v995 = vunpack.c.l.b16 %v985
        %v996 = vpack.c.b16 %v989, %v988
        %v997 = vpack.c.b16 %v991, %v990
        %v998 = vpack.c.b16 %v993, %v992
        %v999 = vpack.c.b16 %v995, %v994
        %v1001 = vsel %vm689, %v996, 0
        %v1004 = vsel %vm689, %v997, 0
        %v1007 = vsel %vm689, %v998, 0
        %v1010 = vsel %vm689, %v999, 0
        %v1013 = vsel %vm702, %v987, 0
        %1015 = vmatprep.subr.bf16.mxu0 0
        %1016 = vmatpush1.bf16.msra.mxu0 %v1013
        %1017 = vmatprep.subr.bf16.mxu0 0
        %1018 = vmatpush1.bf16.msra.mxu0 0
        %1019 = vmatprep.subr.bf16.mxu0 0
        %1020 = vmatpush1.bf16.msra.mxu0 0
        %1021 = vmatprep.subr.bf16.mxu0 0
        %1022 = vmatpush1.bf16.msra.mxu0 0
        %1023 = vmatprep.subr.bf16.mxu0 0
        %1024 = vmatpush1.bf16.msra.mxu0 0
        %1025 = vmatprep.subr.bf16.mxu0 0
        %1026 = vmatpush1.bf16.msra.mxu0 0
        %1027 = vmatprep.subr.bf16.mxu0 0
        %1028 = vmatpush1.bf16.msra.mxu0 0
        %1029 = vmatprep.subr.bf16.mxu0 0
        %1030 = vmatpush1.bf16.msra.mxu0 0
        %1031 = vmatprep.subr.bf16.mxu0 0
        %1032 = vmatpush1.bf16.msra.mxu0 0
        %1033 = vmatprep.subr.bf16.mxu0 0
        %1034 = vmatpush1.bf16.msra.mxu0 0
        %1035 = vmatprep.subr.bf16.mxu0 0
        %1036 = vmatpush1.bf16.msra.mxu0 0
        %1037 = vmatprep.subr.bf16.mxu0 0
        %1038 = vmatpush1.bf16.msra.mxu0 0
        %1039 = vmatprep.subr.bf16.mxu0 0
        %1040 = vmatpush1.bf16.msra.mxu0 0
        %1041 = vmatprep.subr.bf16.mxu0 0
        %1042 = vmatpush1.bf16.msra.mxu0 0
        %1043 = vmatprep.subr.bf16.mxu0 0
        %1044 = vmatpush1.bf16.msra.mxu0 0
        %1045 = vmatprep.subr.bf16.mxu0 0
        %1046 = vmatpush1.bf16.msra.mxu0 0
        %1047 = vmatprep.mubr.bf16.mxu0 0
        %1048 = vmatmul.mubr.bf16.gmra.mrb[0].mxu0 %v1001
        %v1049 = vpop.f32.mrb[0].mxu0
        %v1050 = vadd.f32 0.0, %v1049
        %v1051 = vpop.f32.mrb[0].mxu0
        %v1052 = vpop.f32.mrb[0].mxu0
        %v1053 = vadd.f32 0.0, %v1052
        %v1054 = vpop.f32.mrb[0].mxu0
        %1055 = vmatprep.mubr.bf16.mxu0 0
        %1056 = vmatmul.mubr.bf16.gmra.mrb[0].mxu0 %v1004
        %v1057 = vpop.f32.mrb[0].mxu0
        %v1058 = vadd.f32 0.0, %v1057
        %v1059 = vpop.f32.mrb[0].mxu0
        %v1060 = vpop.f32.mrb[0].mxu0
        %v1061 = vadd.f32 0.0, %v1060
        %v1062 = vpop.f32.mrb[0].mxu0
        %1063 = vmatprep.mubr.bf16.mxu0 0
        %1064 = vmatmul.mubr.bf16.gmra.mrb[0].mxu0 %v1007
        %v1065 = vpop.f32.mrb[0].mxu0
        %v1066 = vadd.f32 0.0, %v1065
        %v1067 = vpop.f32.mrb[0].mxu0
        %v1068 = vpop.f32.mrb[0].mxu0
        %v1069 = vadd.f32 0.0, %v1068
        %v1070 = vpop.f32.mrb[0].mxu0
        %1071 = vmatprep.mubr.bf16.mxu0 0
        %1072 = vmatmul.mubr.bf16.gmra.mrb[0].mxu0 %v1010
        %v1073 = vpop.f32.mrb[0].mxu0
        %v1074 = vadd.f32 0.0, %v1073
        %v1075 = vpop.f32.mrb[0].mxu0
        %v1076 = vpop.f32.mrb[0].mxu0
        %v1077 = vadd.f32 0.0, %v1076
        %v1078 = vpop.f32.mrb[0].mxu0
        %1079 = vdwg.mxu0
        %v1080 = vadd.f32 %v841, %v1050
        %v1081 = vadd.f32 %v844, %v1053
        %v1082 = vadd.f32 %v849, %v1058
        %v1083 = vadd.f32 %v852, %v1061
        %v1084 = vadd.f32 %v857, %v1066
        %v1085 = vadd.f32 %v860, %v1069
        %v1086 = vadd.f32 %v865, %v1074
        %v1087 = vadd.f32 %v868, %v1077
        %s1088 = scalar_lea.vmem %s6, 6
        %v1089 = vld [vmem:[%s1088] sm:$0x3]
        %v1098 = vunpack.c.l.b16 %v642
        %v1099 = vunpack.c.l.b16 %v644
        %v1100 = vunpack.c.l.b16 %v646
        %v1101 = vunpack.c.l.b16 %v648
        %v1102 = vunpack.c.l.b16 %v650
        %v1103 = vunpack.c.l.b16 %v652
        %v1104 = vunpack.c.l.b16 %v654
        %v1105 = vunpack.c.l.b16 %v656
        %v1106 = vpack.c.b16 %v1099, %v1098
        %v1107 = vpack.c.b16 %v1101, %v1100
        %v1108 = vpack.c.b16 %v1103, %v1102
        %v1109 = vpack.c.b16 %v1105, %v1104
        %v1111 = vsel %vm689, %v1106, 0
        %v1114 = vsel %vm689, %v1107, 0
        %v1117 = vsel %vm689, %v1108, 0
        %v1120 = vsel %vm689, %v1109, 0
        %v1123 = vsel %vm702, %v1089, 0
        %1125 = vmatprep.subr.bf16.mxu0 0
        %1126 = vmatpush1.bf16.msra.mxu0 %v1123
        %1127 = vmatprep.subr.bf16.mxu0 0
        %1128 = vmatpush1.bf16.msra.mxu0 0
        %1129 = vmatprep.subr.bf16.mxu0 0
        %1130 = vmatpush1.bf16.msra.mxu0 0
        %1131 = vmatprep.subr.bf16.mxu0 0
        %1132 = vmatpush1.bf16.msra.mxu0 0
        %1133 = vmatprep.subr.bf16.mxu0 0
        %1134 = vmatpush1.bf16.msra.mxu0 0
        %1135 = vmatprep.subr.bf16.mxu0 0
        %1136 = vmatpush1.bf16.msra.mxu0 0
        %1137 = vmatprep.subr.bf16.mxu0 0
        %1138 = vmatpush1.bf16.msra.mxu0 0
        %1139 = vmatprep.subr.bf16.mxu0 0
        %1140 = vmatpush1.bf16.msra.mxu0 0
        %1141 = vmatprep.subr.bf16.mxu0 0
        %1142 = vmatpush1.bf16.msra.mxu0 0
        %1143 = vmatprep.subr.bf16.mxu0 0
        %1144 = vmatpush1.bf16.msra.mxu0 0
        %1145 = vmatprep.subr.bf16.mxu0 0
        %1146 = vmatpush1.bf16.msra.mxu0 0
        %1147 = vmatprep.subr.bf16.mxu0 0
        %1148 = vmatpush1.bf16.msra.mxu0 0
        %1149 = vmatprep.subr.bf16.mxu0 0
        %1150 = vmatpush1.bf16.msra.mxu0 0
        %1151 = vmatprep.subr.bf16.mxu0 0
        %1152 = vmatpush1.bf16.msra.mxu0 0
        %1153 = vmatprep.subr.bf16.mxu0 0
        %1154 = vmatpush1.bf16.msra.mxu0 0
        %1155 = vmatprep.subr.bf16.mxu0 0
        %1156 = vmatpush1.bf16.msra.mxu0 0
        %1157 = vmatprep.mubr.bf16.mxu0 0
        %1158 = vmatmul.mubr.bf16.gmra.mrb[0].mxu0 %v1111
        %v1159 = vpop.f32.mrb[0].mxu0
        %v1160 = vadd.f32 0.0, %v1159
        %v1161 = vpop.f32.mrb[0].mxu0
        %v1162 = vpop.f32.mrb[0].mxu0
        %v1163 = vadd.f32 0.0, %v1162
        %v1164 = vpop.f32.mrb[0].mxu0
        %1165 = vmatprep.mubr.bf16.mxu0 0
        %1166 = vmatmul.mubr.bf16.gmra.mrb[0].mxu0 %v1114
        %v1167 = vpop.f32.mrb[0].mxu0
        %v1168 = vadd.f32 0.0, %v1167
        %v1169 = vpop.f32.mrb[0].mxu0
        %v1170 = vpop.f32.mrb[0].mxu0
        %v1171 = vadd.f32 0.0, %v1170
        %v1172 = vpop.f32.mrb[0].mxu0
        %1173 = vmatprep.mubr.bf16.mxu0 0
        %1174 = vmatmul.mubr.bf16.gmra.mrb[0].mxu0 %v1117
        %v1175 = vpop.f32.mrb[0].mxu0
        %v1176 = vadd.f32 0.0, %v1175
        %v1177 = vpop.f32.mrb[0].mxu0
        %v1178 = vpop.f32.mrb[0].mxu0
        %v1179 = vadd.f32 0.0, %v1178
        %v1180 = vpop.f32.mrb[0].mxu0
        %1181 = vmatprep.mubr.bf16.mxu0 0
        %1182 = vmatmul.mubr.bf16.gmra.mrb[0].mxu0 %v1120
        %v1183 = vpop.f32.mrb[0].mxu0
        %v1184 = vadd.f32 0.0, %v1183
        %v1185 = vpop.f32.mrb[0].mxu0
        %v1186 = vpop.f32.mrb[0].mxu0
        %v1187 = vadd.f32 0.0, %v1186
        %v1188 = vpop.f32.mrb[0].mxu0
        %1189 = vdwg.mxu0
        %v1190 = vadd.f32 %v1080, %v1160
        %v1191 = vadd.f32 %v1081, %v1163
        %v1192 = vadd.f32 %v1082, %v1168
        %v1193 = vadd.f32 %v1083, %v1171
        %v1194 = vadd.f32 %v1084, %v1176
        %v1195 = vadd.f32 %v1085, %v1179
        %v1196 = vadd.f32 %v1086, %v1184
        %v1197 = vadd.f32 %v1087, %v1187
        %s1198 = scalar_lea.vmem %s6, 8
        %v1199 = vld [vmem:[%s1198] sm:$0x3]
        %v1208 = vunpack.c.l.b16 %v658
        %v1209 = vunpack.c.l.b16 %v659
        %v1210 = vunpack.c.l.b16 %v660
        %v1211 = vunpack.c.l.b16 %v661
        %v1212 = vunpack.c.l.b16 %v662
        %v1213 = vunpack.c.l.b16 %v663
        %v1214 = vunpack.c.l.b16 %v664
        %v1215 = vunpack.c.l.b16 %v665
        %v1216 = vpack.c.b16 %v1209, %v1208
        %v1217 = vpack.c.b16 %v1211, %v1210
        %v1218 = vpack.c.b16 %v1213, %v1212
        %v1219 = vpack.c.b16 %v1215, %v1214
        %v1221 = vsel %vm689, %v1216, 0
        %v1224 = vsel %vm689, %v1217, 0
        %v1227 = vsel %vm689, %v1218, 0
        %v1230 = vsel %vm689, %v1219, 0
        %v1233 = vsel %vm702, %v1199, 0
        %1235 = vmatprep.subr.bf16.mxu0 0
        %1236 = vmatpush1.bf16.msra.mxu0 %v1233
        %1237 = vmatprep.subr.bf16.mxu0 0
        %1238 = vmatpush1.bf16.msra.mxu0 0
        %1239 = vmatprep.subr.bf16.mxu0 0
        %1240 = vmatpush1.bf16.msra.mxu0 0
        %1241 = vmatprep.subr.bf16.mxu0 0
        %1242 = vmatpush1.bf16.msra.mxu0 0
        %1243 = vmatprep.subr.bf16.mxu0 0
        %1244 = vmatpush1.bf16.msra.mxu0 0
        %1245 = vmatprep.subr.bf16.mxu0 0
        %1246 = vmatpush1.bf16.msra.mxu0 0
        %1247 = vmatprep.subr.bf16.mxu0 0
        %1248 = vmatpush1.bf16.msra.mxu0 0
        %1249 = vmatprep.subr.bf16.mxu0 0
        %1250 = vmatpush1.bf16.msra.mxu0 0
        %1251 = vmatprep.subr.bf16.mxu0 0
        %1252 = vmatpush1.bf16.msra.mxu0 0
        %1253 = vmatprep.subr.bf16.mxu0 0
        %1254 = vmatpush1.bf16.msra.mxu0 0
        %1255 = vmatprep.subr.bf16.mxu0 0
        %1256 = vmatpush1.bf16.msra.mxu0 0
        %1257 = vmatprep.subr.bf16.mxu0 0
        %1258 = vmatpush1.bf16.msra.mxu0 0
        %1259 = vmatprep.subr.bf16.mxu0 0
        %1260 = vmatpush1.bf16.msra.mxu0 0
        %1261 = vmatprep.subr.bf16.mxu0 0
        %1262 = vmatpush1.bf16.msra.mxu0 0
        %1263 = vmatprep.subr.bf16.mxu0 0
        %1264 = vmatpush1.bf16.msra.mxu0 0
        %1265 = vmatprep.subr.bf16.mxu0 0
        %1266 = vmatpush1.bf16.msra.mxu0 0
        %1267 = vmatprep.mubr.bf16.mxu0 0
        %1268 = vmatmul.mubr.bf16.gmra.mrb[0].mxu0 %v1221
        %v1269 = vpop.f32.mrb[0].mxu0
        %v1270 = vadd.f32 0.0, %v1269
        %v1271 = vpop.f32.mrb[0].mxu0
        %v1272 = vpop.f32.mrb[0].mxu0
        %v1273 = vadd.f32 0.0, %v1272
        %v1274 = vpop.f32.mrb[0].mxu0
        %1275 = vmatprep.mubr.bf16.mxu0 0
        %1276 = vmatmul.mubr.bf16.gmra.mrb[0].mxu0 %v1224
        %v1277 = vpop.f32.mrb[0].mxu0
        %v1278 = vadd.f32 0.0, %v1277
        %v1279 = vpop.f32.mrb[0].mxu0
        %v1280 = vpop.f32.mrb[0].mxu0
        %v1281 = vadd.f32 0.0, %v1280
        %v1282 = vpop.f32.mrb[0].mxu0
        %1283 = vmatprep.mubr.bf16.mxu0 0
        %1284 = vmatmul.mubr.bf16.gmra.mrb[0].mxu0 %v1227
        %v1285 = vpop.f32.mrb[0].mxu0
        %v1286 = vadd.f32 0.0, %v1285
        %v1287 = vpop.f32.mrb[0].mxu0
        %v1288 = vpop.f32.mrb[0].mxu0
        %v1289 = vadd.f32 0.0, %v1288
        %v1290 = vpop.f32.mrb[0].mxu0
        %1291 = vmatprep.mubr.bf16.mxu0 0
        %1292 = vmatmul.mubr.bf16.gmra.mrb[0].mxu0 %v1230
        %v1293 = vpop.f32.mrb[0].mxu0
        %v1294 = vadd.f32 0.0, %v1293
        %v1295 = vpop.f32.mrb[0].mxu0
        %v1296 = vpop.f32.mrb[0].mxu0
        %v1297 = vadd.f32 0.0, %v1296
        %v1298 = vpop.f32.mrb[0].mxu0
        %1299 = vdwg.mxu0
        %v1300 = vadd.f32 %v1190, %v1270
        %v1301 = vadd.f32 %v1191, %v1273
        %v1302 = vadd.f32 %v1192, %v1278
        %v1303 = vadd.f32 %v1193, %v1281
        %v1304 = vadd.f32 %v1194, %v1286
        %v1305 = vadd.f32 %v1195, %v1289
        %v1306 = vadd.f32 %v1196, %v1294
        %v1307 = vadd.f32 %v1197, %v1297
        %v1309 = vshrl.u32 %v642, 16
        %v1311 = vrot.slane %v1309, 4
        %v1312 = vshll.u32 %v642, 16
        %v1314 = vrot.slane %v1312, 5
        %v1315 = vor.u32 %v1311, %v1314
        %v1316 = vrot.slane %v1315, 4
        %v1318 = vshll.u32 %v643, 16
        %v1320 = vrot.slane %v1318, 5
        %v1321 = vsel %vm873, %v1316, %v1320
        %v1323 = vshrl.u32 %v644, 16
        %v1325 = vrot.slane %v1323, 4
        %v1326 = vshll.u32 %v644, 16
        %v1328 = vrot.slane %v1326, 5
        %v1329 = vor.u32 %v1325, %v1328
        %v1330 = vrot.slane %v1329, 4
        %v1332 = vshll.u32 %v645, 16
        %v1334 = vrot.slane %v1332, 5
        %v1335 = vsel %vm873, %v1330, %v1334
        %v1337 = vshrl.u32 %v646, 16
        %v1339 = vrot.slane %v1337, 4
        %v1340 = vshll.u32 %v646, 16
        %v1342 = vrot.slane %v1340, 5
        %v1343 = vor.u32 %v1339, %v1342
        %v1344 = vrot.slane %v1343, 4
        %v1346 = vshll.u32 %v647, 16
        %v1348 = vrot.slane %v1346, 5
        %v1349 = vsel %vm873, %v1344, %v1348
        %v1351 = vshrl.u32 %v648, 16
        %v1353 = vrot.slane %v1351, 4
        %v1354 = vshll.u32 %v648, 16
        %v1356 = vrot.slane %v1354, 5
        %v1357 = vor.u32 %v1353, %v1356
        %v1358 = vrot.slane %v1357, 4
        %v1360 = vshll.u32 %v649, 16
        %v1362 = vrot.slane %v1360, 5
        %v1363 = vsel %vm873, %v1358, %v1362
        %v1365 = vshrl.u32 %v650, 16
        %v1367 = vrot.slane %v1365, 4
        %v1368 = vshll.u32 %v650, 16
        %v1370 = vrot.slane %v1368, 5
        %v1371 = vor.u32 %v1367, %v1370
        %v1372 = vrot.slane %v1371, 4
        %v1374 = vshll.u32 %v651, 16
        %v1376 = vrot.slane %v1374, 5
        %v1377 = vsel %vm873, %v1372, %v1376
        %v1379 = vshrl.u32 %v652, 16
        %v1381 = vrot.slane %v1379, 4
        %v1382 = vshll.u32 %v652, 16
        %v1384 = vrot.slane %v1382, 5
        %v1385 = vor.u32 %v1381, %v1384
        %v1386 = vrot.slane %v1385, 4
        %v1388 = vshll.u32 %v653, 16
        %v1390 = vrot.slane %v1388, 5
        %v1391 = vsel %vm873, %v1386, %v1390
        %v1393 = vshrl.u32 %v654, 16
        %v1395 = vrot.slane %v1393, 4
        %v1396 = vshll.u32 %v654, 16
        %v1398 = vrot.slane %v1396, 5
        %v1399 = vor.u32 %v1395, %v1398
        %v1400 = vrot.slane %v1399, 4
        %v1402 = vshll.u32 %v655, 16
        %v1404 = vrot.slane %v1402, 5
        %v1405 = vsel %vm873, %v1400, %v1404
        %v1407 = vshrl.u32 %v656, 16
        %v1409 = vrot.slane %v1407, 4
        %v1410 = vshll.u32 %v656, 16
        %v1412 = vrot.slane %v1410, 5
        %v1413 = vor.u32 %v1409, %v1412
        %v1414 = vrot.slane %v1413, 4
        %v1416 = vshll.u32 %v657, 16
        %v1418 = vrot.slane %v1416, 5
        %v1419 = vsel %vm873, %v1414, %v1418
        %s1420 = scalar_lea.vmem %s6, 10
        %v1421 = vld [vmem:[%s1420] sm:$0x3]
        %v1422 = vunpack.c.l.b16 %v1321
        %v1423 = vunpack.c.l.b16 %v1335
        %v1424 = vunpack.c.l.b16 %v1349
        %v1425 = vunpack.c.l.b16 %v1363
        %v1426 = vunpack.c.l.b16 %v1377
        %v1427 = vunpack.c.l.b16 %v1391
        %v1428 = vunpack.c.l.b16 %v1405
        %v1429 = vunpack.c.l.b16 %v1419
        %v1430 = vpack.c.b16 %v1423, %v1422
        %v1431 = vpack.c.b16 %v1425, %v1424
        %v1432 = vpack.c.b16 %v1427, %v1426
        %v1433 = vpack.c.b16 %v1429, %v1428
        %v1435 = vsel %vm689, %v1430, 0
        %v1438 = vsel %vm689, %v1431, 0
        %v1441 = vsel %vm689, %v1432, 0
        %v1444 = vsel %vm689, %v1433, 0
        %v1447 = vsel %vm702, %v1421, 0
        %1449 = vmatprep.subr.bf16.mxu0 0
        %1450 = vmatpush1.bf16.msra.mxu0 %v1447
        %1451 = vmatprep.subr.bf16.mxu0 0
        %1452 = vmatpush1.bf16.msra.mxu0 0
        %1453 = vmatprep.subr.bf16.mxu0 0
        %1454 = vmatpush1.bf16.msra.mxu0 0
        %1455 = vmatprep.subr.bf16.mxu0 0
        %1456 = vmatpush1.bf16.msra.mxu0 0
        %1457 = vmatprep.subr.bf16.mxu0 0
        %1458 = vmatpush1.bf16.msra.mxu0 0
        %1459 = vmatprep.subr.bf16.mxu0 0
        %1460 = vmatpush1.bf16.msra.mxu0 0
        %1461 = vmatprep.subr.bf16.mxu0 0
        %1462 = vmatpush1.bf16.msra.mxu0 0
        %1463 = vmatprep.subr.bf16.mxu0 0
        %1464 = vmatpush1.bf16.msra.mxu0 0
        %1465 = vmatprep.subr.bf16.mxu0 0
        %1466 = vmatpush1.bf16.msra.mxu0 0
        %1467 = vmatprep.subr.bf16.mxu0 0
        %1468 = vmatpush1.bf16.msra.mxu0 0
        %1469 = vmatprep.subr.bf16.mxu0 0
        %1470 = vmatpush1.bf16.msra.mxu0 0
        %1471 = vmatprep.subr.bf16.mxu0 0
        %1472 = vmatpush1.bf16.msra.mxu0 0
        %1473 = vmatprep.subr.bf16.mxu0 0
        %1474 = vmatpush1.bf16.msra.mxu0 0
        %1475 = vmatprep.subr.bf16.mxu0 0
        %1476 = vmatpush1.bf16.msra.mxu0 0
        %1477 = vmatprep.subr.bf16.mxu0 0
        %1478 = vmatpush1.bf16.msra.mxu0 0
        %1479 = vmatprep.subr.bf16.mxu0 0
        %1480 = vmatpush1.bf16.msra.mxu0 0
        %1481 = vmatprep.mubr.bf16.mxu0 0
        %1482 = vmatmul.mubr.bf16.gmra.mrb[0].mxu0 %v1435
        %v1483 = vpop.f32.mrb[0].mxu0
        %v1484 = vadd.f32 0.0, %v1483
        %v1485 = vpop.f32.mrb[0].mxu0
        %v1486 = vpop.f32.mrb[0].mxu0
        %v1487 = vadd.f32 0.0, %v1486
        %v1488 = vpop.f32.mrb[0].mxu0
        %1489 = vmatprep.mubr.bf16.mxu0 0
        %1490 = vmatmul.mubr.bf16.gmra.mrb[0].mxu0 %v1438
        %v1491 = vpop.f32.mrb[0].mxu0
        %v1492 = vadd.f32 0.0, %v1491
        %v1493 = vpop.f32.mrb[0].mxu0
        %v1494 = vpop.f32.mrb[0].mxu0
        %v1495 = vadd.f32 0.0, %v1494
        %v1496 = vpop.f32.mrb[0].mxu0
        %1497 = vmatprep.mubr.bf16.mxu0 0
        %1498 = vmatmul.mubr.bf16.gmra.mrb[0].mxu0 %v1441
        %v1499 = vpop.f32.mrb[0].mxu0
        %v1500 = vadd.f32 0.0, %v1499
        %v1501 = vpop.f32.mrb[0].mxu0
        %v1502 = vpop.f32.mrb[0].mxu0
        %v1503 = vadd.f32 0.0, %v1502
        %v1504 = vpop.f32.mrb[0].mxu0
        %1505 = vmatprep.mubr.bf16.mxu0 0
        %1506 = vmatmul.mubr.bf16.gmra.mrb[0].mxu0 %v1444
        %v1507 = vpop.f32.mrb[0].mxu0
        %v1508 = vadd.f32 0.0, %v1507
        %v1509 = vpop.f32.mrb[0].mxu0
        %v1510 = vpop.f32.mrb[0].mxu0
        %v1511 = vadd.f32 0.0, %v1510
        %v1512 = vpop.f32.mrb[0].mxu0
        %1513 = vdwg.mxu0
        %v1514 = vadd.f32 %v1300, %v1484
        %v1515 = vadd.f32 %v1301, %v1487
        %v1516 = vadd.f32 %v1302, %v1492
        %v1517 = vadd.f32 %v1303, %v1495
        %v1518 = vadd.f32 %v1304, %v1500
        %v1519 = vadd.f32 %v1305, %v1503
        %v1520 = vadd.f32 %v1306, %v1508
        %v1521 = vadd.f32 %v1307, %v1511
        %s1522 = scalar_lea.vmem %s6, 12
        %v1523 = vld [vmem:[%s1522] sm:$0x3]
        %v1525 = vunpack.c.l.b16 %v631
        %v1526 = vpack.c.b16 %v781, %v780
        %v1527 = vpack.c.b16 %v783, %v782
        %v1528 = vpack.c.b16 %v785, %v784
        %v1529 = vpack.c.b16 %v1525, %v786
        %v1531 = vsel %vm689, %v1526, 0
        %v1534 = vsel %vm689, %v1527, 0
        %v1537 = vsel %vm689, %v1528, 0
        %v1540 = vsel %vm689, %v1529, 0
        %v1543 = vsel %vm702, %v1523, 0
        %1545 = vmatprep.subr.bf16.mxu0 0
        %1546 = vmatpush1.bf16.msra.mxu0 %v1543
        %1547 = vmatprep.subr.bf16.mxu0 0
        %1548 = vmatpush1.bf16.msra.mxu0 0
        %1549 = vmatprep.subr.bf16.mxu0 0
        %1550 = vmatpush1.bf16.msra.mxu0 0
        %1551 = vmatprep.subr.bf16.mxu0 0
        %1552 = vmatpush1.bf16.msra.mxu0 0
        %1553 = vmatprep.subr.bf16.mxu0 0
        %1554 = vmatpush1.bf16.msra.mxu0 0
        %1555 = vmatprep.subr.bf16.mxu0 0
        %1556 = vmatpush1.bf16.msra.mxu0 0
        %1557 = vmatprep.subr.bf16.mxu0 0
        %1558 = vmatpush1.bf16.msra.mxu0 0
        %1559 = vmatprep.subr.bf16.mxu0 0
        %1560 = vmatpush1.bf16.msra.mxu0 0
        %1561 = vmatprep.subr.bf16.mxu0 0
        %1562 = vmatpush1.bf16.msra.mxu0 0
        %1563 = vmatprep.subr.bf16.mxu0 0
        %1564 = vmatpush1.bf16.msra.mxu0 0
        %1565 = vmatprep.subr.bf16.mxu0 0
        %1566 = vmatpush1.bf16.msra.mxu0 0
        %1567 = vmatprep.subr.bf16.mxu0 0
        %1568 = vmatpush1.bf16.msra.mxu0 0
        %1569 = vmatprep.subr.bf16.mxu0 0
        %1570 = vmatpush1.bf16.msra.mxu0 0
        %1571 = vmatprep.subr.bf16.mxu0 0
        %1572 = vmatpush1.bf16.msra.mxu0 0
        %1573 = vmatprep.subr.bf16.mxu0 0
        %1574 = vmatpush1.bf16.msra.mxu0 0
        %1575 = vmatprep.subr.bf16.mxu0 0
        %1576 = vmatpush1.bf16.msra.mxu0 0
        %1577 = vmatprep.mubr.bf16.mxu0 0
        %1578 = vmatmul.mubr.bf16.gmra.mrb[0].mxu0 %v1531
        %v1579 = vpop.f32.mrb[0].mxu0
        %v1580 = vadd.f32 0.0, %v1579
        %v1581 = vpop.f32.mrb[0].mxu0
        %v1582 = vpop.f32.mrb[0].mxu0
        %v1583 = vadd.f32 0.0, %v1582
        %v1584 = vpop.f32.mrb[0].mxu0
        %1585 = vmatprep.mubr.bf16.mxu0 0
        %1586 = vmatmul.mubr.bf16.gmra.mrb[0].mxu0 %v1534
        %v1587 = vpop.f32.mrb[0].mxu0
        %v1588 = vadd.f32 0.0, %v1587
        %v1589 = vpop.f32.mrb[0].mxu0
        %v1590 = vpop.f32.mrb[0].mxu0
        %v1591 = vadd.f32 0.0, %v1590
        %v1592 = vpop.f32.mrb[0].mxu0
        %1593 = vmatprep.mubr.bf16.mxu0 0
        %1594 = vmatmul.mubr.bf16.gmra.mrb[0].mxu0 %v1537
        %v1595 = vpop.f32.mrb[0].mxu0
        %v1596 = vadd.f32 0.0, %v1595
        %v1597 = vpop.f32.mrb[0].mxu0
        %v1598 = vpop.f32.mrb[0].mxu0
        %v1599 = vadd.f32 0.0, %v1598
        %v1600 = vpop.f32.mrb[0].mxu0
        %1601 = vmatprep.mubr.bf16.mxu0 0
        %1602 = vmatmul.mubr.bf16.gmra.mrb[0].mxu0 %v1540
        %v1603 = vpop.f32.mrb[0].mxu0
        %v1604 = vadd.f32 0.0, %v1603
        %v1605 = vpop.f32.mrb[0].mxu0
        %v1606 = vpop.f32.mrb[0].mxu0
        %v1607 = vadd.f32 0.0, %v1606
        %v1608 = vpop.f32.mrb[0].mxu0
        %1609 = vdwg.mxu0
        %v1610 = vadd.f32 %v1514, %v1580
        %v1611 = vadd.f32 %v1515, %v1583
        %v1612 = vadd.f32 %v1516, %v1588
        %v1613 = vadd.f32 %v1517, %v1591
        %v1614 = vadd.f32 %v1518, %v1596
        %v1615 = vadd.f32 %v1519, %v1599
        %v1616 = vadd.f32 %v1520, %v1604
        %v1617 = vadd.f32 %v1521, %v1607
        %s1618 = scalar_lea.vmem %s6, 14
        %v1619 = vld [vmem:[%s1618] sm:$0x3]
        %v1621 = vunpack.c.l.b16 %v641
        %v1622 = vpack.c.b16 %v679, %v678
        %v1623 = vpack.c.b16 %v681, %v680
        %v1624 = vpack.c.b16 %v683, %v682
        %v1625 = vpack.c.b16 %v1621, %v684
        %v1627 = vsel %vm689, %v1622, 0
        %v1630 = vsel %vm689, %v1623, 0
        %v1633 = vsel %vm689, %v1624, 0
        %v1636 = vsel %vm689, %v1625, 0
        %v1639 = vsel %vm702, %v1619, 0
        %1641 = vmatprep.subr.bf16.mxu0 0
        %1642 = vmatpush1.bf16.msra.mxu0 %v1639
        %1643 = vmatprep.subr.bf16.mxu0 0
        %1644 = vmatpush1.bf16.msra.mxu0 0
        %1645 = vmatprep.subr.bf16.mxu0 0
        %1646 = vmatpush1.bf16.msra.mxu0 0
        %1647 = vmatprep.subr.bf16.mxu0 0
        %1648 = vmatpush1.bf16.msra.mxu0 0
        %1649 = vmatprep.subr.bf16.mxu0 0
        %1650 = vmatpush1.bf16.msra.mxu0 0
        %1651 = vmatprep.subr.bf16.mxu0 0
        %1652 = vmatpush1.bf16.msra.mxu0 0
        %1653 = vmatprep.subr.bf16.mxu0 0
        %1654 = vmatpush1.bf16.msra.mxu0 0
        %1655 = vmatprep.subr.bf16.mxu0 0
        %1656 = vmatpush1.bf16.msra.mxu0 0
        %1657 = vmatprep.subr.bf16.mxu0 0
        %1658 = vmatpush1.bf16.msra.mxu0 0
        %1659 = vmatprep.subr.bf16.mxu0 0
        %1660 = vmatpush1.bf16.msra.mxu0 0
        %1661 = vmatprep.subr.bf16.mxu0 0
        %1662 = vmatpush1.bf16.msra.mxu0 0
        %1663 = vmatprep.subr.bf16.mxu0 0
        %1664 = vmatpush1.bf16.msra.mxu0 0
        %1665 = vmatprep.subr.bf16.mxu0 0
        %1666 = vmatpush1.bf16.msra.mxu0 0
        %1667 = vmatprep.subr.bf16.mxu0 0
        %1668 = vmatpush1.bf16.msra.mxu0 0
        %1669 = vmatprep.subr.bf16.mxu0 0
        %1670 = vmatpush1.bf16.msra.mxu0 0
        %1671 = vmatprep.subr.bf16.mxu0 0
        %1672 = vmatpush1.bf16.msra.mxu0 0
        %1673 = vmatprep.mubr.bf16.mxu0 0
        %1674 = vmatmul.mubr.bf16.gmra.mrb[0].mxu0 %v1627
        %v1675 = vpop.f32.mrb[0].mxu0
        %v1676 = vadd.f32 0.0, %v1675
        %v1677 = vpop.f32.mrb[0].mxu0
        %v1678 = vpop.f32.mrb[0].mxu0
        %v1679 = vadd.f32 0.0, %v1678
        %v1680 = vpop.f32.mrb[0].mxu0
        %1681 = vmatprep.mubr.bf16.mxu0 0
        %1682 = vmatmul.mubr.bf16.gmra.mrb[0].mxu0 %v1630
        %v1683 = vpop.f32.mrb[0].mxu0
        %v1684 = vadd.f32 0.0, %v1683
        %v1685 = vpop.f32.mrb[0].mxu0
        %v1686 = vpop.f32.mrb[0].mxu0
        %v1687 = vadd.f32 0.0, %v1686
        %v1688 = vpop.f32.mrb[0].mxu0
        %1689 = vmatprep.mubr.bf16.mxu0 0
        %1690 = vmatmul.mubr.bf16.gmra.mrb[0].mxu0 %v1633
        %v1691 = vpop.f32.mrb[0].mxu0
        %v1692 = vadd.f32 0.0, %v1691
        %v1693 = vpop.f32.mrb[0].mxu0
        %v1694 = vpop.f32.mrb[0].mxu0
        %v1695 = vadd.f32 0.0, %v1694
        %v1696 = vpop.f32.mrb[0].mxu0
        %1697 = vmatprep.mubr.bf16.mxu0 0
        %1698 = vmatmul.mubr.bf16.gmra.mrb[0].mxu0 %v1636
        %v1699 = vpop.f32.mrb[0].mxu0
        %v1700 = vadd.f32 0.0, %v1699
        %v1701 = vpop.f32.mrb[0].mxu0
        %v1702 = vpop.f32.mrb[0].mxu0
        %v1703 = vadd.f32 0.0, %v1702
        %v1704 = vpop.f32.mrb[0].mxu0
        %1705 = vdwg.mxu0
        %v1706 = vadd.f32 %v1610, %v1676
        %v1707 = vadd.f32 %v1611, %v1679
        %v1708 = vadd.f32 %v1612, %v1684
        %v1709 = vadd.f32 %v1613, %v1687
        %v1710 = vadd.f32 %v1614, %v1692
        %v1711 = vadd.f32 %v1615, %v1695
        %v1712 = vadd.f32 %v1616, %v1700
        %v1713 = vadd.f32 %v1617, %v1703
        %v1715 = vshrl.u32 %v631, 16
        %v1717 = vrot.slane %v1715, 4
        %v1718 = vshll.u32 %v631, 16
        %v1720 = vrot.slane %v1718, 5
        %v1721 = vor.u32 %v1717, %v1720
        %v1722 = vrot.slane %v1721, 4
        %v1724 = vshll.u32 %v632, 16
        %v1726 = vrot.slane %v1724, 5
        %v1727 = vsel %vm873, %v1722, %v1726
        %s1728 = scalar_lea.vmem %s6, 16
        %v1729 = vld [vmem:[%s1728] sm:$0x3]
        %v1730 = vunpack.c.l.b16 %v1727
        %v1731 = vpack.c.b16 %v990, %v989
        %v1732 = vpack.c.b16 %v992, %v991
        %v1733 = vpack.c.b16 %v994, %v993
        %v1734 = vpack.c.b16 %v1730, %v995
        %v1736 = vsel %vm689, %v1731, 0
        %v1739 = vsel %vm689, %v1732, 0
        %v1742 = vsel %vm689, %v1733, 0
        %v1745 = vsel %vm689, %v1734, 0
        %v1748 = vsel %vm702, %v1729, 0
        %1750 = vmatprep.subr.bf16.mxu0 0
        %1751 = vmatpush1.bf16.msra.mxu0 %v1748
        %1752 = vmatprep.subr.bf16.mxu0 0
        %1753 = vmatpush1.bf16.msra.mxu0 0
        %1754 = vmatprep.subr.bf16.mxu0 0
        %1755 = vmatpush1.bf16.msra.mxu0 0
        %1756 = vmatprep.subr.bf16.mxu0 0
        %1757 = vmatpush1.bf16.msra.mxu0 0
        %1758 = vmatprep.subr.bf16.mxu0 0
        %1759 = vmatpush1.bf16.msra.mxu0 0
        %1760 = vmatprep.subr.bf16.mxu0 0
        %1761 = vmatpush1.bf16.msra.mxu0 0
        %1762 = vmatprep.subr.bf16.mxu0 0
        %1763 = vmatpush1.bf16.msra.mxu0 0
        %1764 = vmatprep.subr.bf16.mxu0 0
        %1765 = vmatpush1.bf16.msra.mxu0 0
        %1766 = vmatprep.subr.bf16.mxu0 0
        %1767 = vmatpush1.bf16.msra.mxu0 0
        %1768 = vmatprep.subr.bf16.mxu0 0
        %1769 = vmatpush1.bf16.msra.mxu0 0
        %1770 = vmatprep.subr.bf16.mxu0 0
        %1771 = vmatpush1.bf16.msra.mxu0 0
        %1772 = vmatprep.subr.bf16.mxu0 0
        %1773 = vmatpush1.bf16.msra.mxu0 0
        %1774 = vmatprep.subr.bf16.mxu0 0
        %1775 = vmatpush1.bf16.msra.mxu0 0
        %1776 = vmatprep.subr.bf16.mxu0 0
        %1777 = vmatpush1.bf16.msra.mxu0 0
        %1778 = vmatprep.subr.bf16.mxu0 0
        %1779 = vmatpush1.bf16.msra.mxu0 0
        %1780 = vmatprep.subr.bf16.mxu0 0
        %1781 = vmatpush1.bf16.msra.mxu0 0
        %1782 = vmatprep.mubr.bf16.mxu0 0
        %1783 = vmatmul.mubr.bf16.gmra.mrb[0].mxu0 %v1736
        %v1784 = vpop.f32.mrb[0].mxu0
        %v1785 = vadd.f32 0.0, %v1784
        %v1786 = vpop.f32.mrb[0].mxu0
        %v1787 = vpop.f32.mrb[0].mxu0
        %v1788 = vadd.f32 0.0, %v1787
        %v1789 = vpop.f32.mrb[0].mxu0
        %1790 = vmatprep.mubr.bf16.mxu0 0
        %1791 = vmatmul.mubr.bf16.gmra.mrb[0].mxu0 %v1739
        %v1792 = vpop.f32.mrb[0].mxu0
        %v1793 = vadd.f32 0.0, %v1792
        %v1794 = vpop.f32.mrb[0].mxu0
        %v1795 = vpop.f32.mrb[0].mxu0
        %v1796 = vadd.f32 0.0, %v1795
        %v1797 = vpop.f32.mrb[0].mxu0
        %1798 = vmatprep.mubr.bf16.mxu0 0
        %1799 = vmatmul.mubr.bf16.gmra.mrb[0].mxu0 %v1742
        %v1800 = vpop.f32.mrb[0].mxu0
        %v1801 = vadd.f32 0.0, %v1800
        %v1802 = vpop.f32.mrb[0].mxu0
        %v1803 = vpop.f32.mrb[0].mxu0
        %v1804 = vadd.f32 0.0, %v1803
        %v1805 = vpop.f32.mrb[0].mxu0
        %1806 = vmatprep.mubr.bf16.mxu0 0
        %1807 = vmatmul.mubr.bf16.gmra.mrb[0].mxu0 %v1745
        %v1808 = vpop.f32.mrb[0].mxu0
        %v1809 = vadd.f32 0.0, %v1808
        %v1810 = vpop.f32.mrb[0].mxu0
        %v1811 = vpop.f32.mrb[0].mxu0
        %v1812 = vadd.f32 0.0, %v1811
        %v1813 = vpop.f32.mrb[0].mxu0
        %1814 = vdwg.mxu0
        %v1815 = vadd.f32 %v1706, %v1785
        %v1816 = vadd.f32 %v1707, %v1788
        %v1817 = vadd.f32 %v1708, %v1793
        %v1818 = vadd.f32 %v1709, %v1796
        %v1819 = vadd.f32 %v1710, %v1801
        %v1820 = vadd.f32 %v1711, %v1804
        %v1821 = vadd.f32 %v1712, %v1809
        %v1822 = vadd.f32 %v1713, %v1812
        %vm1823 = vcmask 64512
        %v1824 = vsel %vm1823, %v1815, 0.0
        %1825 = vadd.xlane.f32.xlu0 %v1824
        %v1826 = vpop.xlane.xlu0 %1825
        %v1827 = vsel %vm1823, %v1816, 0.0
        %1828 = vadd.xlane.f32.xlu0 %v1827
        %v1829 = vpop.xlane.xlu0 %1828
        %v1830 = vsel %vm1823, %v1817, 0.0
        %1831 = vadd.xlane.f32.xlu0 %v1830
        %v1832 = vpop.xlane.xlu0 %1831
        %v1833 = vsel %vm1823, %v1818, 0.0
        %1834 = vadd.xlane.f32.xlu0 %v1833
        %v1835 = vpop.xlane.xlu0 %1834
        %v1836 = vsel %vm1823, %v1819, 0.0
        %1837 = vadd.xlane.f32.xlu0 %v1836
        %v1838 = vpop.xlane.xlu0 %1837
        %v1839 = vsel %vm1823, %v1820, 0.0
        %1840 = vadd.xlane.f32.xlu0 %v1839
        %v1841 = vpop.xlane.xlu0 %1840
        %v1842 = vsel %vm1823, %v1821, 0.0
        %1843 = vadd.xlane.f32.xlu0 %v1842
        %v1844 = vpop.xlane.xlu0 %1843
        %v1845 = vsel %vm1823, %v1822, 0.0
        %1846 = vadd.xlane.f32.xlu0 %v1845
        %v1847 = vpop.xlane.xlu0 %1846
        %v1848 = vrcp.pop 8.0
        %v1849 = vmul.f32 %v1826, %v1848
        %v1850 = vmul.f32 %v1829, %v1848
        %v1851 = vmul.f32 %v1832, %v1848
        %v1852 = vmul.f32 %v1835, %v1848
        %v1853 = vmul.f32 %v1838, %v1848
        %v1854 = vmul.f32 %v1841, %v1848
        %v1855 = vmul.f32 %v1844, %v1848
        %v1856 = vmul.f32 %v1847, %v1848
        %v1857 = vsub.f32 %v1815, %v1849
        %v1858 = vsub.f32 %v1816, %v1850
        %v1859 = vsub.f32 %v1817, %v1851
        %v1860 = vsub.f32 %v1818, %v1852
        %v1861 = vsub.f32 %v1819, %v1853
        %v1862 = vsub.f32 %v1820, %v1854
        %v1863 = vsub.f32 %v1821, %v1855
        %v1864 = vsub.f32 %v1822, %v1856
        %v1865 = vmul.f32 %v1857, %v1857
        %v1866 = vmul.f32 %v1858, %v1858
        %v1867 = vmul.f32 %v1859, %v1859
        %v1868 = vmul.f32 %v1860, %v1860
        %v1869 = vmul.f32 %v1861, %v1861
        %v1870 = vmul.f32 %v1862, %v1862
        %v1871 = vmul.f32 %v1863, %v1863
        %v1872 = vmul.f32 %v1864, %v1864
        %v1873 = vsel %vm1823, %v1865, 0.0
        %1874 = vadd.xlane.f32.xlu0 %v1873
        %v1875 = vpop.xlane.xlu0 %1874
        %v1876 = vsel %vm1823, %v1866, 0.0
        %1877 = vadd.xlane.f32.xlu0 %v1876
        %v1878 = vpop.xlane.xlu0 %1877
        %v1879 = vsel %vm1823, %v1867, 0.0
        %1880 = vadd.xlane.f32.xlu0 %v1879
        %v1881 = vpop.xlane.xlu0 %1880
        %v1882 = vsel %vm1823, %v1868, 0.0
        %1883 = vadd.xlane.f32.xlu0 %v1882
        %v1884 = vpop.xlane.xlu0 %1883
        %v1885 = vsel %vm1823, %v1869, 0.0
        %1886 = vadd.xlane.f32.xlu0 %v1885
        %v1887 = vpop.xlane.xlu0 %1886
        %v1888 = vsel %vm1823, %v1870, 0.0
        %1889 = vadd.xlane.f32.xlu0 %v1888
        %v1890 = vpop.xlane.xlu0 %1889
        %v1891 = vsel %vm1823, %v1871, 0.0
        %1892 = vadd.xlane.f32.xlu0 %v1891
        %v1893 = vpop.xlane.xlu0 %1892
        %v1894 = vsel %vm1823, %v1872, 0.0
        %1895 = vadd.xlane.f32.xlu0 %v1894
        %v1896 = vpop.xlane.xlu0 %1895
        %v1897 = vmul.f32 %v1875, %v1848
        %v1898 = vmul.f32 %v1878, %v1848
        %v1899 = vmul.f32 %v1881, %v1848
        %v1900 = vmul.f32 %v1884, %v1848
        %v1901 = vmul.f32 %v1887, %v1848
        %v1902 = vmul.f32 %v1890, %v1848
        %v1903 = vmul.f32 %v1893, %v1848
        %v1904 = vmul.f32 %v1896, %v1848
        %v1905 = vadd.f32 %v1897, 1e-05
        %v1906 = vadd.f32 %v1898, 1e-05
        %v1907 = vadd.f32 %v1899, 1e-05
        %v1908 = vadd.f32 %v1900, 1e-05
        %v1909 = vadd.f32 %v1901, 1e-05
        %v1910 = vadd.f32 %v1902, 1e-05
        %v1911 = vadd.f32 %v1903, 1e-05
        %v1912 = vadd.f32 %v1904, 1e-05
        %v1913 = vrsqrt.pop %v1905
        %v1914 = vrsqrt.pop %v1906
        %v1915 = vrsqrt.pop %v1907
        %v1916 = vrsqrt.pop %v1908
        %v1917 = vrsqrt.pop %v1909
        %v1918 = vrsqrt.pop %v1910
        %v1919 = vrsqrt.pop %v1911
        %v1920 = vrsqrt.pop %v1912
        %v1921 = vmul.f32 %v1857, %v1913
        %v1922 = vmul.f32 %v1858, %v1914
        %v1923 = vmul.f32 %v1859, %v1915
        %v1924 = vmul.f32 %v1860, %v1916
        %v1925 = vmul.f32 %v1861, %v1917
        %v1926 = vmul.f32 %v1862, %v1918
        %v1927 = vmul.f32 %v1863, %v1919
        %v1928 = vmul.f32 %v1864, %v1920
        %v1929 = vld [vmem:[%s7] sm:$0x1]
        %v1931 = vlaneseq
        %v1932 = vshrl.u32 %v1931, 7
        %v1933 = vsub.s32 0, %v1932
        %v1934 = vrot.slane %v1929, %v1933
        %v1936 = vmul.f32 %v1921, %v1934
        %v1937 = vmul.f32 %v1922, %v1934
        %v1938 = vmul.f32 %v1923, %v1934
        %v1939 = vmul.f32 %v1924, %v1934
        %v1940 = vmul.f32 %v1925, %v1934
        %v1941 = vmul.f32 %v1926, %v1934
        %v1942 = vmul.f32 %v1927, %v1934
        %v1943 = vmul.f32 %v1928, %v1934
        %v1944 = vld [vmem:[%s8] sm:$0x1]
        %v1946 = vlaneseq
        %v1947 = vshrl.u32 %v1946, 7
        %v1948 = vsub.s32 0, %v1947
        %v1949 = vrot.slane %v1944, %v1948
        %v1951 = vadd.f32 %v1936, %v1949
        %v1952 = vadd.f32 %v1937, %v1949
        %v1953 = vadd.f32 %v1938, %v1949
        %v1954 = vadd.f32 %v1939, %v1949
        %v1955 = vadd.f32 %v1940, %v1949
        %v1956 = vadd.f32 %v1941, %v1949
        %v1957 = vadd.f32 %v1942, %v1949
        %v1958 = vadd.f32 %v1943, %v1949
        %1959 = vst.msk [vmem:[%s527] sm:$0xff] %vm1823, %v1951
        %1960 = vst.msk [vmem:[%s527 + $0x8] sm:$0xff] %vm1823, %v1952
        %1961 = vst.msk [vmem:[%s527 + $0x10] sm:$0xff] %vm1823, %v1953
        %1962 = vst.msk [vmem:[%s527 + $0x18] sm:$0xff] %vm1823, %v1954
        %1963 = vst.msk [vmem:[%s527 + $0x20] sm:$0xff] %vm1823, %v1955
        %1964 = vst.msk [vmem:[%s527 + $0x28] sm:$0xff] %vm1823, %v1956
        %1965 = vst.msk [vmem:[%s527 + $0x30] sm:$0xff] %vm1823, %v1957
        %1966 = vst.msk [vmem:[%s527 + $0x38] sm:$0xff] %vm1823, %v1958
        %s1967 = sand.u32 %s284, 1
        %s1968 = scalar_lea.sflag [#allocation3], %s1967
        %s1969 = sand.u32 %s284, 1
        %s1970 = smul.addr %s1969, 64
        %s1971 = scalar_lea.vmem [#allocation2], %s1970
        // Predicated region
        $region57: #{conv_downsampler.1} parent=55 // pred_check
          %p1972 = pneg %p294
        $region58: #{conv_downsampler.1} parent=55 // pred_check_branch
          %1974 = sbr.rel (%p1972) target = $region60
        $region59: #{conv_downsampler.1} parent=55 // pred_region
          %s1975 = smul.u32 8, %s28
          %s1977 = ssub.s32 1024, 1024
          %1978 = vsyncadd %s1968, %s1977
          %s1979 = smul.addr %s27, 8
          %s1980 = sadd.s32 %s1975, %s1979
          %s1981 = smul.addr %s1980, 128
          %s1982 = scalar_lea.hbm %s9, %s1981
          %s1983 = sshll.u32 %s1971, 4
          %s1984 = int_to_ptr.vmem [resolvable:$true] %s1983
          %1989 = dma.vmem_to_hbm [thread:$0]  %s1984, 1024, %s1982, %s1968, 128, 128, 8
        $region60: #{conv_downsampler.1} parent=55 // pred_fallthru
          _
      $region56: #{conv_downsampler.1} parent=5 // pred_fallthru
        _
      %p1990 = scmp.le.s32.totalorder 2, %s18
      // Predicated region
      $region61: #{conv_downsampler.1} parent=5 // pred_check
        %p1991 = pneg %p1990
      $region62: #{conv_downsampler.1} parent=5 // pred_check_branch
        %1993 = sbr.rel (%p1991) target = $region64
      $region63: #{conv_downsampler.1} parent=5 // pred_region
        %s1994 = ssub.s32 %s18, 2
        // Predicated region
        $region65: #{conv_downsampler.1} parent=63 // pred_check
          %p1995 = pneg %p300
        $region66: #{conv_downsampler.1} parent=63 // pred_check_branch
          %1997 = sbr.rel (%p1995) target = $region68
        $region67: #{conv_downsampler.1} parent=63 // pred_region
          %s1998 = sand.u32 %s285, 1
          %s1999 = scalar_lea.sflag [#allocation3], %s1998
          %s2000 = sand.u32 %s285, 1
          %s2001 = smul.addr %s2000, 64
          %s2002 = scalar_lea.vmem [#allocation2], %s2001
          %2003 = dma.done %s1999, 1024
        $region68: #{conv_downsampler.1} parent=63 // pred_fallthru
          _
      $region64: #{conv_downsampler.1} parent=5 // pred_fallthru
        _
    $region6: #{conv_downsampler.1} parent=1 // loop_footer
      %s22 = sadd.s32 1, %s18
    $region7: #{conv_downsampler.1} parent=1 // loop_footer_branch
      %17 = sbr.rel target = $region3
    $region8: #{conv_downsampler.1} parent=1 // loop_exit
      _
    %2004 = vsyncpa [#allocation3], 1
    %s2005 = scalar_lea.sflag [#allocation3], 1
    %2006 = vsyncpa %s2005, 1

</llo_original>
